<compile_context>
chip_gen: v5e
topology: v5e:2x2
jax: 0.10.0
libtpu: 0.0.40
codegen_flags: <defaults>
</compile_context>

<pallas_src>
import numpy as np
import jax
import jax.numpy as jnp
from jax.experimental import pallas as pl
from jax.experimental.pallas import tpu as pltpu


def _fold_dft_matrices(L, M):
    """Fold rfft (first M bins kept) and irfft(n=L) into two real (L, L) matrices.

    y[t2, n, o] = sum_{t, i} x[t, n, i] * (P[t2, t] * wr[i, o] + Q[t2, t] * wi[i, o])
    """
    t = np.arange(L, dtype=np.float64)
    k = np.arange(M, dtype=np.float64)
    theta_f = 2.0 * np.pi * np.outer(k, t) / L            # (M, L)
    Fr = np.cos(theta_f)                                   # Re of rfft
    Fi = -np.sin(theta_f)                                  # Im of rfft
    ki = np.arange(M)
    # irfft weighting: 1 for DC and (even-L) Nyquist bins, 2 otherwise; the
    # imaginary parts of those bins are multiplied by sin(...) = 0, matching
    # pocketfft/torch behaviour of ignoring them.
    ck = np.where((ki == 0) | ((L % 2 == 0) & (ki == L // 2)), 1.0, 2.0)
    theta_b = 2.0 * np.pi * np.outer(t, ki.astype(np.float64)) / L   # (L, M)
    Ar = (ck[None, :] / L) * np.cos(theta_b)
    Ai = -(ck[None, :] / L) * np.sin(theta_b)
    P = Ar @ Fr + Ai @ Fi                                  # (L, L) pairs with Re(W)
    Q = Ai @ Fr - Ar @ Fi                                  # (L, L) pairs with Im(W)
    return P.astype(np.float32), Q.astype(np.float32)


def _spectral_kernel(x_ref, w_ref, o_ref):
    # x_ref: (L*C, tn)   w_ref: (L*O, L*C)   o_ref: (L*O, tn)
    # One MXU matmul per tile.  K (= L*C <= 64) is tiny, so the op is HBM /
    # step-overhead bound; keeping HIGHEST precision is free and gives exact
    # f32 results (MXU utilization is irrelevant here).
    o_ref[...] = jnp.dot(
        w_ref[...], x_ref[...],
        preferred_element_type=jnp.float32,
        precision=jax.lax.Precision.HIGHEST,
    )


def simplified_spectral_conv1d(x, weights, modes):
    """x: (B, N, C) float, weights: (C, O, modes) complex64 -> (B, N, O) float32."""
    B, N, C = x.shape
    O = weights.shape[1]
    modes_eff = min(modes, 4)
    L = min(8, B)
    K = L // 2 + 1
    M = min(modes_eff, K)            # bins actually written (torch slicing semantics)

    # einsum('bni,iom->bno') sums m -> effective complex weight (C, O).
    w_sum = jnp.sum(weights, axis=-1)
    wr = jnp.real(w_sum).astype(jnp.float32)
    wi = jnp.imag(w_sum).astype(jnp.float32)

    # Fold rfft -> complex mix -> irfft into one real (L*O, L*C) matrix.
    P, Q = _fold_dft_matrices(L, M)
    w4 = (jnp.einsum('st,io->soti', jnp.asarray(P), wr)
          + jnp.einsum('st,io->soti', jnp.asarray(Q), wi))    # (L, O, L, C)
    w_mat = w4.reshape(L * O, L * C)

    # Lane-dense layout: x -> (L*C, N).  rfft(n=L) over dim 0 only ever trims,
    # so only the first L time steps are ever read.
    x_t = x[:L].astype(jnp.float32).transpose(0, 2, 1).reshape(L * C, N)

    # Tile sizing: one block for small/medium N (single grid step, no pad /
    # slice passes); tn = 4096 (>= 2 MiB traffic/step) for large N so the
    # ~0.35 us per-step overhead is fully amortized and v7x's two TensorCores
    # both get >= 1 step via dimension_semantics=('parallel',).
    n128 = pl.cdiv(N, 128) * 128
    tn = n128 if n128 <= 8192 else 4096
    grid_n = pl.cdiv(N, tn)

    LO, LC = L * O, L * C
    cost = pl.CostEstimate(
        flops=2 * LO * LC * N,
        transcendentals=0,
        bytes_accessed=4 * (LC * N + LO * N + LO * LC),
    )

    out = pl.pallas_call(
        _spectral_kernel,
        out_shape=jax.ShapeDtypeStruct((LO, N), jnp.float32),
        grid_spec=pltpu.PrefetchScalarGridSpec(
            num_scalar_prefetch=0,
            grid=(grid_n,),
            in_specs=[
                pl.BlockSpec((LC, tn), lambda i: (0, i)),
                pl.BlockSpec((LO, LC), lambda i: (0, 0)),   # resident weight (16 KiB)
            ],
            out_specs=pl.BlockSpec((LO, tn), lambda i: (0, i)),
        ),
        compiler_params=pltpu.CompilerParams(dimension_semantics=("parallel",)),
        cost_estimate=cost,
    )(x_t, w_mat)

    # Back to (L, N, O) in one XLA pass, then zero-pad the time axis to B
    # (F.pad semantics).  Kept outside the kernel to keep stores lane-dense.
    y = out.reshape(L, O, N).transpose(0, 2, 1)
    if L < B:
        y = jnp.pad(y, ((0, B - L), (0, 0), (0, 0)))
    return y


def reference_forward(x, weights, modes):
    """Pure-JAX mirror of the PyTorch forward (validation only)."""
    B, N, _ = x.shape
    modes = min(modes, 4)
    L = min(8, B)
    x_ft = jnp.fft.rfft(x.astype(jnp.float32), n=L, axis=0)
    out_ft = jnp.zeros((x_ft.shape[0], N, weights.shape[1]), dtype=jnp.complex64)
    mm = jnp.einsum('bni,iom->bno', x_ft[:modes], weights,
                    precision=jax.lax.Precision.HIGHEST)
    out_ft = out_ft.at[: mm.shape[0]].set(mm)
    y = jnp.fft.irfft(out_ft, n=L, axis=0)
    if y.shape[0] < B:
        y = jnp.pad(y, ((0, B - y.shape[0]), (0, 0), (0, 0)))
    return y[:B]


def _make_case(key, B, N, C, O, modes):
    kx, kr, ki = jax.random.split(key, 3)
    x = jax.random.normal(kx, (B, N, C), dtype=jnp.float32)
    # Same shape/semantics as scale * torch.rand(C, O, modes, dtype=complex64).
    scale = 1.0 / (C * O)
    m_eff = min(modes, 4)
    weights = (scale * (jax.random.uniform(kr, (C, O, m_eff), dtype=jnp.float32)
                        + 1j * jax.random.uniform(ki, (C, O, m_eff), dtype=jnp.float32))
               ).astype(jnp.complex64)
    return x, weights


if __name__ == "__main__":
    key = jax.random.PRNGKey(0)
    # Case 1: shipped config (L=8, modes=3, lane-aligned N).
    # Case 2: B=6  -> even L=6 with modes=4 hits the Nyquist bin handling.
    # Case 3: B=7  -> odd L, N not a multiple of 128 exercises edge-block masking.
    cases = [
        dict(B=16, N=512, C=8, O=8, modes=3),
        dict(B=6,  N=256, C=4, O=8, modes=4),
        dict(B=7,  N=300, C=8, O=8, modes=4),
    ]
    for i, cfg in enumerate(cases):
        key, sub = jax.random.split(key)
        x, weights = _make_case(sub, **cfg)
        out = jax.block_until_ready(simplified_spectral_conv1d(x, weights, cfg["modes"]))
        ref = jax.block_until_ready(reference_forward(x, weights, cfg["modes"]))
        assert out.shape == (cfg["B"], cfg["N"], cfg["O"]) and out.dtype == jnp.float32
        np.testing.assert_allclose(np.asarray(out), np.asarray(ref), rtol=1e-2, atol=1e-3)
    print("KERNEL_OK")
</pallas_src>

<mosaic_0001>
module attributes {stable_mosaic.version = 11 : i64} {
  func.func @_spectral_kernel(%arg0: i32, %arg1: memref<64x512xf32, #tpu.memory_space<vmem>>, %arg2: memref<64x64xf32, #tpu.memory_space<vmem>>, %arg3: memref<64x512xf32, #tpu.memory_space<vmem>>) attributes {dimension_semantics = [#tpu.dimension_semantics<parallel>], iteration_bounds = array<i64: 1>, scalar_prefetch = 0 : i64, scratch_operands = 0 : i64, tpu.core_type = #tpu.core_type<tc>, window_params = [{transform_indices = @transform_0, window_bounds = array<i64: 64, 512>}, {pipeline_mode = #tpu.pipeline_mode<synchronous>, transform_indices = @transform_1, window_bounds = array<i64: 64, 64>}, {transform_indices = @transform_2, window_bounds = array<i64: 64, 512>}]} {
    %c0 = arith.constant 0 : index
    %c0_0 = arith.constant 0 : index
    %0 = vector.load %arg2[%c0, %c0_0] : memref<64x64xf32, #tpu.memory_space<vmem>>, vector<64x64xf32>
    %c0_1 = arith.constant 0 : index
    %c0_2 = arith.constant 0 : index
    %1 = vector.load %arg1[%c0_1, %c0_2] : memref<64x512xf32, #tpu.memory_space<vmem>>, vector<64x512xf32>
    %cst = arith.constant dense<0.000000e+00> : vector<64x512xf32>
    %2 = tpu.matmul %0, %1, %cst {dimension_numbers = #tpu.dot_dimension_numbers<[1], [0], [0], [1], [0, 0, 1, 1], [], []>, precision = #tpu.contract_precision<fp32>} : vector<64x64xf32>, vector<64x512xf32>, vector<64x512xf32> -> vector<64x512xf32>
    %c0_3 = arith.constant 0 : index
    %c0_4 = arith.constant 0 : index
    %3 = vector.load %arg3[%c0_3, %c0_4] : memref<64x512xf32, #tpu.memory_space<vmem>>, vector<64x512xf32>
    tpu.vector_store %arg3[%c0_3, %c0_4], %2 {strides = array<i32>} : memref<64x512xf32, #tpu.memory_space<vmem>>, vector<64x512xf32>,
    return
  }
  func.func @transform_0(%arg0: i32) -> (i32, i32) {
    %c0_i32 = arith.constant 0 : i32
    %c0_i32_0 = arith.constant 0 : i32
    return %c0_i32, %arg0 : i32, i32
  }
  func.func @transform_1(%arg0: i32) -> (i32, i32) {
    %c0_i32 = arith.constant 0 : i32
    %c0_i32_0 = arith.constant 0 : i32
    %c0_i32_1 = arith.constant 0 : i32
    return %c0_i32, %c0_i32_0 : i32, i32
  }
  func.func @transform_2(%arg0: i32) -> (i32, i32) {
    %c0_i32 = arith.constant 0 : i32
    %c0_i32_0 = arith.constant 0 : i32
    return %c0_i32, %arg0 : i32, i32
  }
}

</mosaic_0001>

<llo_original>
// kernel: tpu_custom_call.1
$region0: #{tpu_custom_call.1}
  #allocation0 [shape = 'u32[]', space=smem, size = 0x4, offset = 0x4, fixed_abs, tag = 'smem constant byte address 0x4 - core index']
  #allocation1 [shape = 'u32[72,128]{1,0:T(1,128)}', space=vmem, size = 0x9000, scoped, tag = 'internal scratch']
  %s0 = inlined_call_operand.hbm [shape: f32[64,512], index: 0, kind: input, shape index: {}]
  %s1 = inlined_call_operand.hbm [shape: f32[64,64], index: 1, kind: input, shape index: {}]
  %s2 = inlined_call_operand.hbm [shape: f32[64,512], index: 2, kind: output, shape index: {}]
  %s3 = sld [smem:[#allocation0]]
  $region26: #{tpu_custom_call.1} parent=0
    _
  %s5 = ssub.s32 1, %s3
  %s6 = scalar_select 0, %s5, %s3
  $region1: #{tpu_custom_call.1} parent=0
    #allocation2 [shape = 'u8[131072]{0}', space=vmem, size = 0x20000, scoped, tag = 'input window, operand 0, single buffered']
    #allocation3 [shape = 's32[1]{0}', space=sflag, size = 0x4, scoped, tag = 'scoped memory for tpu_custom_call.1']
    #allocation4 [shape = 's32[1]{0}', space=sflag, size = 0x4, scoped, tag = 'scoped memory for tpu_custom_call.1']
    #allocation5 [shape = 'u8[32768]{0}', space=vmem, size = 0x8000, scoped, tag = 'input window, operand 1, single buffered']
    #allocation6 [shape = 's32[1]{0}', space=sflag, size = 0x4, scoped, tag = 'scoped memory for tpu_custom_call.1']
    #allocation7 [shape = 'u8[131072]{0}', space=vmem, size = 0x20000, scoped, tag = 'output window, operand 0, single buffered']
    %7 = vsyncpa [#allocation3], 0
    %8 = vsyncpa [#allocation6], 0
    %9 = vsyncpa [#allocation4], 0
    // Predicated region
    $region2: #{tpu_custom_call.1} parent=1 // pred_check
      _
    $region3: #{tpu_custom_call.1} parent=1 // pred_check_branch
      %11 = sbr.rel (0) target = $region5
    $region4: #{tpu_custom_call.1} parent=1 // pred_region
      %13 = vsyncadd [#allocation3], 0
      %s14 = sshll.u32 %s0, 4
      %s15 = int_to_ptr.hbm [resolvable:$true] %s14
      %s16 = sshll.u32 [#allocation2], 4
      %s17 = int_to_ptr.vmem [resolvable:$true] %s16
      %22 = dma.hbm_to_vmem [thread:$0]  %s15, 4096, %s17, [#allocation3], 512, 512, 32
    $region5: #{tpu_custom_call.1} parent=1 // pred_fallthru
      _
    // Predicated region
    $region6: #{tpu_custom_call.1} parent=1 // pred_check
      _
    $region7: #{tpu_custom_call.1} parent=1 // pred_check_branch
      %24 = sbr.rel (0) target = $region9
    $region8: #{tpu_custom_call.1} parent=1 // pred_region
      %26 = vsyncadd [#allocation6], 0
      %s27 = sshll.u32 %s1, 4
      %s28 = int_to_ptr.hbm [resolvable:$true] %s27
      %s29 = sshll.u32 [#allocation5], 4
      %s30 = int_to_ptr.vmem [resolvable:$true] %s29
      %35 = dma.hbm_to_vmem [thread:$0]  %s28, 1024, %s30, [#allocation6], 128, 128, 8
    $region9: #{tpu_custom_call.1} parent=1 // pred_fallthru
      _
    // Predicated region
    $region10: #{tpu_custom_call.1} parent=1 // pred_check
      _
    $region11: #{tpu_custom_call.1} parent=1 // pred_check_branch
      %37 = sbr.rel (0) target = $region13
    $region12: #{tpu_custom_call.1} parent=1 // pred_region
      %39 = dma.done [#allocation3], 4096
    $region13: #{tpu_custom_call.1} parent=1 // pred_fallthru
      _
    // Predicated region
    $region14: #{tpu_custom_call.1} parent=1 // pred_check
      _
    $region15: #{tpu_custom_call.1} parent=1 // pred_check_branch
      %41 = sbr.rel (0) target = $region17
    $region16: #{tpu_custom_call.1} parent=1 // pred_region
      %43 = dma.done [#allocation6], 1024
    $region17: #{tpu_custom_call.1} parent=1 // pred_fallthru
      _
    %v44 = vld [vmem:[#allocation5] sm:$0xff]
    %v45 = vld [vmem:[#allocation5 + $0x8] sm:$0xff]
    %v46 = vld [vmem:[#allocation5 + $0x10] sm:$0xff]
    %v47 = vld [vmem:[#allocation5 + $0x18] sm:$0xff]
    %v48 = vld [vmem:[#allocation5 + $0x20] sm:$0xff]
    %v49 = vld [vmem:[#allocation5 + $0x28] sm:$0xff]
    %v50 = vld [vmem:[#allocation5 + $0x30] sm:$0xff]
    %v51 = vld [vmem:[#allocation5 + $0x38] sm:$0xff]
    %v52 = vld [vmem:[#allocation2] sm:$0xff]
    %v53 = vld [vmem:[#allocation2 + $0x8] sm:$0xff]
    %v54 = vld [vmem:[#allocation2 + $0x10] sm:$0xff]
    %v55 = vld [vmem:[#allocation2 + $0x18] sm:$0xff]
    %v56 = vld [vmem:[#allocation2 + $0x20] sm:$0xff]
    %v57 = vld [vmem:[#allocation2 + $0x28] sm:$0xff]
    %v58 = vld [vmem:[#allocation2 + $0x30] sm:$0xff]
    %v59 = vld [vmem:[#allocation2 + $0x38] sm:$0xff]
    %v60 = vld [vmem:[#allocation2 + $0x40] sm:$0xff]
    %v61 = vld [vmem:[#allocation2 + $0x48] sm:$0xff]
    %v62 = vld [vmem:[#allocation2 + $0x50] sm:$0xff]
    %v63 = vld [vmem:[#allocation2 + $0x58] sm:$0xff]
    %v64 = vld [vmem:[#allocation2 + $0x60] sm:$0xff]
    %v65 = vld [vmem:[#allocation2 + $0x68] sm:$0xff]
    %v66 = vld [vmem:[#allocation2 + $0x70] sm:$0xff]
    %v67 = vld [vmem:[#allocation2 + $0x78] sm:$0xff]
    %v68 = vld [vmem:[#allocation2 + $0x80] sm:$0xff]
    %v69 = vld [vmem:[#allocation2 + $0x88] sm:$0xff]
    %v70 = vld [vmem:[#allocation2 + $0x90] sm:$0xff]
    %v71 = vld [vmem:[#allocation2 + $0x98] sm:$0xff]
    %v72 = vld [vmem:[#allocation2 + $0xa0] sm:$0xff]
    %v73 = vld [vmem:[#allocation2 + $0xa8] sm:$0xff]
    %v74 = vld [vmem:[#allocation2 + $0xb0] sm:$0xff]
    %v75 = vld [vmem:[#allocation2 + $0xb8] sm:$0xff]
    %v76 = vld [vmem:[#allocation2 + $0xc0] sm:$0xff]
    %v77 = vld [vmem:[#allocation2 + $0xc8] sm:$0xff]
    %v78 = vld [vmem:[#allocation2 + $0xd0] sm:$0xff]
    %v79 = vld [vmem:[#allocation2 + $0xd8] sm:$0xff]
    %v80 = vld [vmem:[#allocation2 + $0xe0] sm:$0xff]
    %v81 = vld [vmem:[#allocation2 + $0xe8] sm:$0xff]
    %v82 = vld [vmem:[#allocation2 + $0xf0] sm:$0xff]
    %v83 = vld [vmem:[#allocation2 + $0xf8] sm:$0xff]
    %vm84 = vcmask 523264
    %v86 = vsel %vm84, %v44, 0
    %v89 = vsel %vm84, %v45, 0
    %v92 = vsel %vm84, %v46, 0
    %v95 = vsel %vm84, %v47, 0
    %v98 = vsel %vm84, %v48, 0
    %v101 = vsel %vm84, %v49, 0
    %v104 = vsel %vm84, %v50, 0
    %v107 = vsel %vm84, %v51, 0
    %109 = vmatpush.msra.mxu0 0.0
    %110 = vmatpush.msra.mxu0 0.0
    %111 = vmatpush.msra.mxu0 0.0
    %112 = vmatpush.msra.mxu0 0.0
    %113 = vmatpush.msra.mxu0 0.0
    %114 = vmatpush.msra.mxu0 0.0
    %115 = vmatpush.msra.mxu0 0.0
    %116 = vmatpush.msra.mxu0 0.0
    %v117 = vand.u32 %v80, 4294901760
    %118 = vmatpush.msra.mxu0 %v117
    %v119 = vand.u32 %v76, 4294901760
    %120 = vmatpush.msra.mxu0 %v119
    %v121 = vand.u32 %v72, 4294901760
    %122 = vmatpush.msra.mxu0 %v121
    %v123 = vand.u32 %v68, 4294901760
    %124 = vmatpush.msra.mxu0 %v123
    %v125 = vand.u32 %v64, 4294901760
    %126 = vmatpush.msra.mxu0 %v125
    %v127 = vand.u32 %v60, 4294901760
    %128 = vmatpush.msra.mxu0 %v127
    %v129 = vand.u32 %v56, 4294901760
    %130 = vmatpush.msra.mxu0 %v129
    %v131 = vand.u32 %v52, 4294901760
    %132 = vmatpush.msra.mxu0 %v131
    %v133 = vand.u32 %v86, 4294901760
    %v134 = vsub.f32 %v86, %v133
    %v135 = vand.u32 %v134, 4294901760
    %v136 = vsub.f32 %v134, %v135
    %v137 = vand.u32 %v136, 4294901760
    %138 = vmatmul.f32.gmra.mxu0 %v137
    %v139 = vpop.f32.mrf.mxu0
    %v140 = vadd.f32 0.0, %v139
    %v141 = vand.u32 %v89, 4294901760
    %v142 = vsub.f32 %v89, %v141
    %v143 = vand.u32 %v142, 4294901760
    %v144 = vsub.f32 %v142, %v143
    %v145 = vand.u32 %v144, 4294901760
    %146 = vmatmul.f32.gmra.mxu0 %v145
    %v147 = vpop.f32.mrf.mxu0
    %v148 = vadd.f32 0.0, %v147
    %v149 = vand.u32 %v92, 4294901760
    %v150 = vsub.f32 %v92, %v149
    %v151 = vand.u32 %v150, 4294901760
    %v152 = vsub.f32 %v150, %v151
    %v153 = vand.u32 %v152, 4294901760
    %154 = vmatmul.f32.gmra.mxu0 %v153
    %v155 = vpop.f32.mrf.mxu0
    %v156 = vadd.f32 0.0, %v155
    %v157 = vand.u32 %v95, 4294901760
    %v158 = vsub.f32 %v95, %v157
    %v159 = vand.u32 %v158, 4294901760
    %v160 = vsub.f32 %v158, %v159
    %v161 = vand.u32 %v160, 4294901760
    %162 = vmatmul.f32.gmra.mxu0 %v161
    %v163 = vpop.f32.mrf.mxu0
    %v164 = vadd.f32 0.0, %v163
    %v165 = vand.u32 %v98, 4294901760
    %v166 = vsub.f32 %v98, %v165
    %v167 = vand.u32 %v166, 4294901760
    %v168 = vsub.f32 %v166, %v167
    %v169 = vand.u32 %v168, 4294901760
    %170 = vmatmul.f32.gmra.mxu0 %v169
    %v171 = vpop.f32.mrf.mxu0
    %v172 = vadd.f32 0.0, %v171
    %v173 = vand.u32 %v101, 4294901760
    %v174 = vsub.f32 %v101, %v173
    %v175 = vand.u32 %v174, 4294901760
    %v176 = vsub.f32 %v174, %v175
    %v177 = vand.u32 %v176, 4294901760
    %178 = vmatmul.f32.gmra.mxu0 %v177
    %v179 = vpop.f32.mrf.mxu0
    %v180 = vadd.f32 0.0, %v179
    %v181 = vand.u32 %v104, 4294901760
    %v182 = vsub.f32 %v104, %v181
    %v183 = vand.u32 %v182, 4294901760
    %v184 = vsub.f32 %v182, %v183
    %v185 = vand.u32 %v184, 4294901760
    %186 = vmatmul.f32.gmra.mxu0 %v185
    %v187 = vpop.f32.mrf.mxu0
    %v188 = vadd.f32 0.0, %v187
    %v189 = vand.u32 %v107, 4294901760
    %v190 = vsub.f32 %v107, %v189
    %v191 = vand.u32 %v190, 4294901760
    %v192 = vsub.f32 %v190, %v191
    %v193 = vand.u32 %v192, 4294901760
    %194 = vmatmul.f32.gmra.mxu0 %v193
    %v195 = vpop.f32.mrf.mxu0
    %v196 = vadd.f32 0.0, %v195
    %197 = vdwg.mxu0
    %198 = vmatpush.msra.mxu0 0.0
    %199 = vmatpush.msra.mxu0 0.0
    %200 = vmatpush.msra.mxu0 0.0
    %201 = vmatpush.msra.mxu0 0.0
    %202 = vmatpush.msra.mxu0 0.0
    %203 = vmatpush.msra.mxu0 0.0
    %204 = vmatpush.msra.mxu0 0.0
    %205 = vmatpush.msra.mxu0 0.0
    %v206 = vand.u32 %v80, 4294901760
    %v207 = vsub.f32 %v80, %v206
    %v208 = vand.u32 %v207, 4294901760
    %v209 = vsub.f32 %v207, %v208
    %v210 = vand.u32 %v209, 4294901760
    %211 = vmatpush.msra.mxu0 %v210
    %v212 = vand.u32 %v76, 4294901760
    %v213 = vsub.f32 %v76, %v212
    %v214 = vand.u32 %v213, 4294901760
    %v215 = vsub.f32 %v213, %v214
    %v216 = vand.u32 %v215, 4294901760
    %217 = vmatpush.msra.mxu0 %v216
    %v218 = vand.u32 %v72, 4294901760
    %v219 = vsub.f32 %v72, %v218
    %v220 = vand.u32 %v219, 4294901760
    %v221 = vsub.f32 %v219, %v220
    %v222 = vand.u32 %v221, 4294901760
    %223 = vmatpush.msra.mxu0 %v222
    %v224 = vand.u32 %v68, 4294901760
    %v225 = vsub.f32 %v68, %v224
    %v226 = vand.u32 %v225, 4294901760
    %v227 = vsub.f32 %v225, %v226
    %v228 = vand.u32 %v227, 4294901760
    %229 = vmatpush.msra.mxu0 %v228
    %v230 = vand.u32 %v64, 4294901760
    %v231 = vsub.f32 %v64, %v230
    %v232 = vand.u32 %v231, 4294901760
    %v233 = vsub.f32 %v231, %v232
    %v234 = vand.u32 %v233, 4294901760
    %235 = vmatpush.msra.mxu0 %v234
    %v236 = vand.u32 %v60, 4294901760
    %v237 = vsub.f32 %v60, %v236
    %v238 = vand.u32 %v237, 4294901760
    %v239 = vsub.f32 %v237, %v238
    %v240 = vand.u32 %v239, 4294901760
    %241 = vmatpush.msra.mxu0 %v240
    %v242 = vand.u32 %v56, 4294901760
    %v243 = vsub.f32 %v56, %v242
    %v244 = vand.u32 %v243, 4294901760
    %v245 = vsub.f32 %v243, %v244
    %v246 = vand.u32 %v245, 4294901760
    %247 = vmatpush.msra.mxu0 %v246
    %v248 = vand.u32 %v52, 4294901760
    %v249 = vsub.f32 %v52, %v248
    %v250 = vand.u32 %v249, 4294901760
    %v251 = vsub.f32 %v249, %v250
    %v252 = vand.u32 %v251, 4294901760
    %253 = vmatpush.msra.mxu0 %v252
    %v254 = vand.u32 %v86, 4294901760
    %255 = vmatmul.f32.gmra.mxu0 %v254
    %v256 = vpop.f32.mrf.mxu0
    %v257 = vadd.f32 %v140, %v256
    %v258 = vand.u32 %v89, 4294901760
    %259 = vmatmul.f32.gmra.mxu0 %v258
    %v260 = vpop.f32.mrf.mxu0
    %v261 = vadd.f32 %v148, %v260
    %v262 = vand.u32 %v92, 4294901760
    %263 = vmatmul.f32.gmra.mxu0 %v262
    %v264 = vpop.f32.mrf.mxu0
    %v265 = vadd.f32 %v156, %v264
    %v266 = vand.u32 %v95, 4294901760
    %267 = vmatmul.f32.gmra.mxu0 %v266
    %v268 = vpop.f32.mrf.mxu0
    %v269 = vadd.f32 %v164, %v268
    %v270 = vand.u32 %v98, 4294901760
    %271 = vmatmul.f32.gmra.mxu0 %v270
    %v272 = vpop.f32.mrf.mxu0
    %v273 = vadd.f32 %v172, %v272
    %v274 = vand.u32 %v101, 4294901760
    %275 = vmatmul.f32.gmra.mxu0 %v274
    %v276 = vpop.f32.mrf.mxu0
    %v277 = vadd.f32 %v180, %v276
    %v278 = vand.u32 %v104, 4294901760
    %279 = vmatmul.f32.gmra.mxu0 %v278
    %v280 = vpop.f32.mrf.mxu0
    %v281 = vadd.f32 %v188, %v280
    %v282 = vand.u32 %v107, 4294901760
    %283 = vmatmul.f32.gmra.mxu0 %v282
    %v284 = vpop.f32.mrf.mxu0
    %v285 = vadd.f32 %v196, %v284
    %286 = vdwg.mxu0
    %287 = vmatpush.msra.mxu0 0.0
    %288 = vmatpush.msra.mxu0 0.0
    %289 = vmatpush.msra.mxu0 0.0
    %290 = vmatpush.msra.mxu0 0.0
    %291 = vmatpush.msra.mxu0 0.0
    %292 = vmatpush.msra.mxu0 0.0
    %293 = vmatpush.msra.mxu0 0.0
    %294 = vmatpush.msra.mxu0 0.0
    %v295 = vand.u32 %v80, 4294901760
    %v296 = vsub.f32 %v80, %v295
    %297 = vmatpush.msra.mxu0 %v296
    %v298 = vand.u32 %v76, 4294901760
    %v299 = vsub.f32 %v76, %v298
    %300 = vmatpush.msra.mxu0 %v299
    %v301 = vand.u32 %v72, 4294901760
    %v302 = vsub.f32 %v72, %v301
    %303 = vmatpush.msra.mxu0 %v302
    %v304 = vand.u32 %v68, 4294901760
    %v305 = vsub.f32 %v68, %v304
    %306 = vmatpush.msra.mxu0 %v305
    %v307 = vand.u32 %v64, 4294901760
    %v308 = vsub.f32 %v64, %v307
    %309 = vmatpush.msra.mxu0 %v308
    %v310 = vand.u32 %v60, 4294901760
    %v311 = vsub.f32 %v60, %v310
    %312 = vmatpush.msra.mxu0 %v311
    %v313 = vand.u32 %v56, 4294901760
    %v314 = vsub.f32 %v56, %v313
    %315 = vmatpush.msra.mxu0 %v314
    %v316 = vand.u32 %v52, 4294901760
    %v317 = vsub.f32 %v52, %v316
    %318 = vmatpush.msra.mxu0 %v317
    %v319 = vand.u32 %v86, 4294901760
    %v320 = vsub.f32 %v86, %v319
    %321 = vmatmul.f32.gmra.mxu0 %v320
    %v322 = vpop.f32.mrf.mxu0
    %v323 = vadd.f32 %v257, %v322
    %v324 = vand.u32 %v89, 4294901760
    %v325 = vsub.f32 %v89, %v324
    %326 = vmatmul.f32.gmra.mxu0 %v325
    %v327 = vpop.f32.mrf.mxu0
    %v328 = vadd.f32 %v261, %v327
    %v329 = vand.u32 %v92, 4294901760
    %v330 = vsub.f32 %v92, %v329
    %331 = vmatmul.f32.gmra.mxu0 %v330
    %v332 = vpop.f32.mrf.mxu0
    %v333 = vadd.f32 %v265, %v332
    %v334 = vand.u32 %v95, 4294901760
    %v335 = vsub.f32 %v95, %v334
    %336 = vmatmul.f32.gmra.mxu0 %v335
    %v337 = vpop.f32.mrf.mxu0
    %v338 = vadd.f32 %v269, %v337
    %v339 = vand.u32 %v98, 4294901760
    %v340 = vsub.f32 %v98, %v339
    %341 = vmatmul.f32.gmra.mxu0 %v340
    %v342 = vpop.f32.mrf.mxu0
    %v343 = vadd.f32 %v273, %v342
    %v344 = vand.u32 %v101, 4294901760
    %v345 = vsub.f32 %v101, %v344
    %346 = vmatmul.f32.gmra.mxu0 %v345
    %v347 = vpop.f32.mrf.mxu0
    %v348 = vadd.f32 %v277, %v347
    %v349 = vand.u32 %v104, 4294901760
    %v350 = vsub.f32 %v104, %v349
    %351 = vmatmul.f32.gmra.mxu0 %v350
    %v352 = vpop.f32.mrf.mxu0
    %v353 = vadd.f32 %v281, %v352
    %v354 = vand.u32 %v107, 4294901760
    %v355 = vsub.f32 %v107, %v354
    %356 = vmatmul.f32.gmra.mxu0 %v355
    %v357 = vpop.f32.mrf.mxu0
    %v358 = vadd.f32 %v285, %v357
    %359 = vdwg.mxu0
    %360 = vmatpush.msra.mxu0 0.0
    %361 = vmatpush.msra.mxu0 0.0
    %362 = vmatpush.msra.mxu0 0.0
    %363 = vmatpush.msra.mxu0 0.0
    %364 = vmatpush.msra.mxu0 0.0
    %365 = vmatpush.msra.mxu0 0.0
    %366 = vmatpush.msra.mxu0 0.0
    %367 = vmatpush.msra.mxu0 0.0
    %v368 = vand.u32 %v80, 4294901760
    %369 = vmatpush.msra.mxu0 %v368
    %v370 = vand.u32 %v76, 4294901760
    %371 = vmatpush.msra.mxu0 %v370
    %v372 = vand.u32 %v72, 4294901760
    %373 = vmatpush.msra.mxu0 %v372
    %v374 = vand.u32 %v68, 4294901760
    %375 = vmatpush.msra.mxu0 %v374
    %v376 = vand.u32 %v64, 4294901760
    %377 = vmatpush.msra.mxu0 %v376
    %v378 = vand.u32 %v60, 4294901760
    %379 = vmatpush.msra.mxu0 %v378
    %v380 = vand.u32 %v56, 4294901760
    %381 = vmatpush.msra.mxu0 %v380
    %v382 = vand.u32 %v52, 4294901760
    %383 = vmatpush.msra.mxu0 %v382
    %v384 = vand.u32 %v86, 4294901760
    %v385 = vsub.f32 %v86, %v384
    %v386 = vand.u32 %v385, 4294901760
    %387 = vmatmul.f32.gmra.mxu0 %v386
    %v388 = vpop.f32.mrf.mxu0
    %v389 = vadd.f32 %v323, %v388
    %v390 = vand.u32 %v89, 4294901760
    %v391 = vsub.f32 %v89, %v390
    %v392 = vand.u32 %v391, 4294901760
    %393 = vmatmul.f32.gmra.mxu0 %v392
    %v394 = vpop.f32.mrf.mxu0
    %v395 = vadd.f32 %v328, %v394
    %v396 = vand.u32 %v92, 4294901760
    %v397 = vsub.f32 %v92, %v396
    %v398 = vand.u32 %v397, 4294901760
    %399 = vmatmul.f32.gmra.mxu0 %v398
    %v400 = vpop.f32.mrf.mxu0
    %v401 = vadd.f32 %v333, %v400
    %v402 = vand.u32 %v95, 4294901760
    %v403 = vsub.f32 %v95, %v402
    %v404 = vand.u32 %v403, 4294901760
    %405 = vmatmul.f32.gmra.mxu0 %v404
    %v406 = vpop.f32.mrf.mxu0
    %v407 = vadd.f32 %v338, %v406
    %v408 = vand.u32 %v98, 4294901760
    %v409 = vsub.f32 %v98, %v408
    %v410 = vand.u32 %v409, 4294901760
    %411 = vmatmul.f32.gmra.mxu0 %v410
    %v412 = vpop.f32.mrf.mxu0
    %v413 = vadd.f32 %v343, %v412
    %v414 = vand.u32 %v101, 4294901760
    %v415 = vsub.f32 %v101, %v414
    %v416 = vand.u32 %v415, 4294901760
    %417 = vmatmul.f32.gmra.mxu0 %v416
    %v418 = vpop.f32.mrf.mxu0
    %v419 = vadd.f32 %v348, %v418
    %v420 = vand.u32 %v104, 4294901760
    %v421 = vsub.f32 %v104, %v420
    %v422 = vand.u32 %v421, 4294901760
    %423 = vmatmul.f32.gmra.mxu0 %v422
    %v424 = vpop.f32.mrf.mxu0
    %v425 = vadd.f32 %v353, %v424
    %v426 = vand.u32 %v107, 4294901760
    %v427 = vsub.f32 %v107, %v426
    %v428 = vand.u32 %v427, 4294901760
    %429 = vmatmul.f32.gmra.mxu0 %v428
    %v430 = vpop.f32.mrf.mxu0
    %v431 = vadd.f32 %v358, %v430
    %432 = vdwg.mxu0
    %433 = vmatpush.msra.mxu0 0.0
    %434 = vmatpush.msra.mxu0 0.0
    %435 = vmatpush.msra.mxu0 0.0
    %436 = vmatpush.msra.mxu0 0.0
    %437 = vmatpush.msra.mxu0 0.0
    %438 = vmatpush.msra.mxu0 0.0
    %439 = vmatpush.msra.mxu0 0.0
    %440 = vmatpush.msra.mxu0 0.0
    %v441 = vand.u32 %v80, 4294901760
    %v442 = vsub.f32 %v80, %v441
    %v443 = vand.u32 %v442, 4294901760
    %444 = vmatpush.msra.mxu0 %v443
    %v445 = vand.u32 %v76, 4294901760
    %v446 = vsub.f32 %v76, %v445
    %v447 = vand.u32 %v446, 4294901760
    %448 = vmatpush.msra.mxu0 %v447
    %v449 = vand.u32 %v72, 4294901760
    %v450 = vsub.f32 %v72, %v449
    %v451 = vand.u32 %v450, 4294901760
    %452 = vmatpush.msra.mxu0 %v451
    %v453 = vand.u32 %v68, 4294901760
    %v454 = vsub.f32 %v68, %v453
    %v455 = vand.u32 %v454, 4294901760
    %456 = vmatpush.msra.mxu0 %v455
    %v457 = vand.u32 %v64, 4294901760
    %v458 = vsub.f32 %v64, %v457
    %v459 = vand.u32 %v458, 4294901760
    %460 = vmatpush.msra.mxu0 %v459
    %v461 = vand.u32 %v60, 4294901760
    %v462 = vsub.f32 %v60, %v461
    %v463 = vand.u32 %v462, 4294901760
    %464 = vmatpush.msra.mxu0 %v463
    %v465 = vand.u32 %v56, 4294901760
    %v466 = vsub.f32 %v56, %v465
    %v467 = vand.u32 %v466, 4294901760
    %468 = vmatpush.msra.mxu0 %v467
    %v469 = vand.u32 %v52, 4294901760
    %v470 = vsub.f32 %v52, %v469
    %v471 = vand.u32 %v470, 4294901760
    %472 = vmatpush.msra.mxu0 %v471
    %v473 = vand.u32 %v86, 4294901760
    %474 = vmatmul.f32.gmra.mxu0 %v473
    %v475 = vpop.f32.mrf.mxu0
    %v476 = vadd.f32 %v389, %v475
    %v477 = vand.u32 %v89, 4294901760
    %478 = vmatmul.f32.gmra.mxu0 %v477
    %v479 = vpop.f32.mrf.mxu0
    %v480 = vadd.f32 %v395, %v479
    %v481 = vand.u32 %v92, 4294901760
    %482 = vmatmul.f32.gmra.mxu0 %v481
    %v483 = vpop.f32.mrf.mxu0
    %v484 = vadd.f32 %v401, %v483
    %v485 = vand.u32 %v95, 4294901760
    %486 = vmatmul.f32.gmra.mxu0 %v485
    %v487 = vpop.f32.mrf.mxu0
    %v488 = vadd.f32 %v407, %v487
    %v489 = vand.u32 %v98, 4294901760
    %490 = vmatmul.f32.gmra.mxu0 %v489
    %v491 = vpop.f32.mrf.mxu0
    %v492 = vadd.f32 %v413, %v491
    %v493 = vand.u32 %v101, 4294901760
    %494 = vmatmul.f32.gmra.mxu0 %v493
    %v495 = vpop.f32.mrf.mxu0
    %v496 = vadd.f32 %v419, %v495
    %v497 = vand.u32 %v104, 4294901760
    %498 = vmatmul.f32.gmra.mxu0 %v497
    %v499 = vpop.f32.mrf.mxu0
    %v500 = vadd.f32 %v425, %v499
    %v501 = vand.u32 %v107, 4294901760
    %502 = vmatmul.f32.gmra.mxu0 %v501
    %v503 = vpop.f32.mrf.mxu0
    %v504 = vadd.f32 %v431, %v503
    %505 = vdwg.mxu0
    %506 = vmatpush.msra.mxu0 0.0
    %507 = vmatpush.msra.mxu0 0.0
    %508 = vmatpush.msra.mxu0 0.0
    %509 = vmatpush.msra.mxu0 0.0
    %510 = vmatpush.msra.mxu0 0.0
    %511 = vmatpush.msra.mxu0 0.0
    %512 = vmatpush.msra.mxu0 0.0
    %513 = vmatpush.msra.mxu0 0.0
    %v514 = vand.u32 %v80, 4294901760
    %515 = vmatpush.msra.mxu0 %v514
    %v516 = vand.u32 %v76, 4294901760
    %517 = vmatpush.msra.mxu0 %v516
    %v518 = vand.u32 %v72, 4294901760
    %519 = vmatpush.msra.mxu0 %v518
    %v520 = vand.u32 %v68, 4294901760
    %521 = vmatpush.msra.mxu0 %v520
    %v522 = vand.u32 %v64, 4294901760
    %523 = vmatpush.msra.mxu0 %v522
    %v524 = vand.u32 %v60, 4294901760
    %525 = vmatpush.msra.mxu0 %v524
    %v526 = vand.u32 %v56, 4294901760
    %527 = vmatpush.msra.mxu0 %v526
    %v528 = vand.u32 %v52, 4294901760
    %529 = vmatpush.msra.mxu0 %v528
    %v530 = vand.u32 %v86, 4294901760
    %531 = vmatmul.f32.gmra.mxu0 %v530
    %v532 = vpop.f32.mrf.mxu0
    %v533 = vadd.f32 %v476, %v532
    %v534 = vand.u32 %v89, 4294901760
    %535 = vmatmul.f32.gmra.mxu0 %v534
    %v536 = vpop.f32.mrf.mxu0
    %v537 = vadd.f32 %v480, %v536
    %v538 = vand.u32 %v92, 4294901760
    %539 = vmatmul.f32.gmra.mxu0 %v538
    %v540 = vpop.f32.mrf.mxu0
    %v541 = vadd.f32 %v484, %v540
    %v542 = vand.u32 %v95, 4294901760
    %543 = vmatmul.f32.gmra.mxu0 %v542
    %v544 = vpop.f32.mrf.mxu0
    %v545 = vadd.f32 %v488, %v544
    %v546 = vand.u32 %v98, 4294901760
    %547 = vmatmul.f32.gmra.mxu0 %v546
    %v548 = vpop.f32.mrf.mxu0
    %v549 = vadd.f32 %v492, %v548
    %v550 = vand.u32 %v101, 4294901760
    %551 = vmatmul.f32.gmra.mxu0 %v550
    %v552 = vpop.f32.mrf.mxu0
    %v553 = vadd.f32 %v496, %v552
    %v554 = vand.u32 %v104, 4294901760
    %555 = vmatmul.f32.gmra.mxu0 %v554
    %v556 = vpop.f32.mrf.mxu0
    %v557 = vadd.f32 %v500, %v556
    %v558 = vand.u32 %v107, 4294901760
    %559 = vmatmul.f32.gmra.mxu0 %v558
    %v560 = vpop.f32.mrf.mxu0
    %v561 = vadd.f32 %v504, %v560
    %562 = vdwg.mxu0
    %563 = vmatpush.msra.mxu0 0.0
    %564 = vmatpush.msra.mxu0 0.0
    %565 = vmatpush.msra.mxu0 0.0
    %566 = vmatpush.msra.mxu0 0.0
    %567 = vmatpush.msra.mxu0 0.0
    %568 = vmatpush.msra.mxu0 0.0
    %569 = vmatpush.msra.mxu0 0.0
    %570 = vmatpush.msra.mxu0 0.0
    %v571 = vand.u32 %v81, 4294901760
    %572 = vmatpush.msra.mxu0 %v571
    %v573 = vand.u32 %v77, 4294901760
    %574 = vmatpush.msra.mxu0 %v573
    %v575 = vand.u32 %v73, 4294901760
    %576 = vmatpush.msra.mxu0 %v575
    %v577 = vand.u32 %v69, 4294901760
    %578 = vmatpush.msra.mxu0 %v577
    %v579 = vand.u32 %v65, 4294901760
    %580 = vmatpush.msra.mxu0 %v579
    %v581 = vand.u32 %v61, 4294901760
    %582 = vmatpush.msra.mxu0 %v581
    %v583 = vand.u32 %v57, 4294901760
    %584 = vmatpush.msra.mxu0 %v583
    %v585 = vand.u32 %v53, 4294901760
    %586 = vmatpush.msra.mxu0 %v585
    %v587 = vand.u32 %v86, 4294901760
    %v588 = vsub.f32 %v86, %v587
    %v589 = vand.u32 %v588, 4294901760
    %v590 = vsub.f32 %v588, %v589
    %v591 = vand.u32 %v590, 4294901760
    %592 = vmatmul.f32.gmra.mxu0 %v591
    %v593 = vpop.f32.mrf.mxu0
    %v594 = vadd.f32 0.0, %v593
    %v595 = vand.u32 %v89, 4294901760
    %v596 = vsub.f32 %v89, %v595
    %v597 = vand.u32 %v596, 4294901760
    %v598 = vsub.f32 %v596, %v597
    %v599 = vand.u32 %v598, 4294901760
    %600 = vmatmul.f32.gmra.mxu0 %v599
    %v601 = vpop.f32.mrf.mxu0
    %v602 = vadd.f32 0.0, %v601
    %v603 = vand.u32 %v92, 4294901760
    %v604 = vsub.f32 %v92, %v603
    %v605 = vand.u32 %v604, 4294901760
    %v606 = vsub.f32 %v604, %v605
    %v607 = vand.u32 %v606, 4294901760
    %608 = vmatmul.f32.gmra.mxu0 %v607
    %v609 = vpop.f32.mrf.mxu0
    %v610 = vadd.f32 0.0, %v609
    %v611 = vand.u32 %v95, 4294901760
    %v612 = vsub.f32 %v95, %v611
    %v613 = vand.u32 %v612, 4294901760
    %v614 = vsub.f32 %v612, %v613
    %v615 = vand.u32 %v614, 4294901760
    %616 = vmatmul.f32.gmra.mxu0 %v615
    %v617 = vpop.f32.mrf.mxu0
    %v618 = vadd.f32 0.0, %v617
    %v619 = vand.u32 %v98, 4294901760
    %v620 = vsub.f32 %v98, %v619
    %v621 = vand.u32 %v620, 4294901760
    %v622 = vsub.f32 %v620, %v621
    %v623 = vand.u32 %v622, 4294901760
    %624 = vmatmul.f32.gmra.mxu0 %v623
    %v625 = vpop.f32.mrf.mxu0
    %v626 = vadd.f32 0.0, %v625
    %v627 = vand.u32 %v101, 4294901760
    %v628 = vsub.f32 %v101, %v627
    %v629 = vand.u32 %v628, 4294901760
    %v630 = vsub.f32 %v628, %v629
    %v631 = vand.u32 %v630, 4294901760
    %632 = vmatmul.f32.gmra.mxu0 %v631
    %v633 = vpop.f32.mrf.mxu0
    %v634 = vadd.f32 0.0, %v633
    %v635 = vand.u32 %v104, 4294901760
    %v636 = vsub.f32 %v104, %v635
    %v637 = vand.u32 %v636, 4294901760
    %v638 = vsub.f32 %v636, %v637
    %v639 = vand.u32 %v638, 4294901760
    %640 = vmatmul.f32.gmra.mxu0 %v639
    %v641 = vpop.f32.mrf.mxu0
    %v642 = vadd.f32 0.0, %v641
    %v643 = vand.u32 %v107, 4294901760
    %v644 = vsub.f32 %v107, %v643
    %v645 = vand.u32 %v644, 4294901760
    %v646 = vsub.f32 %v644, %v645
    %v647 = vand.u32 %v646, 4294901760
    %648 = vmatmul.f32.gmra.mxu0 %v647
    %v649 = vpop.f32.mrf.mxu0
    %v650 = vadd.f32 0.0, %v649
    %651 = vdwg.mxu0
    %652 = vmatpush.msra.mxu0 0.0
    %653 = vmatpush.msra.mxu0 0.0
    %654 = vmatpush.msra.mxu0 0.0
    %655 = vmatpush.msra.mxu0 0.0
    %656 = vmatpush.msra.mxu0 0.0
    %657 = vmatpush.msra.mxu0 0.0
    %658 = vmatpush.msra.mxu0 0.0
    %659 = vmatpush.msra.mxu0 0.0
    %v660 = vand.u32 %v81, 4294901760
    %v661 = vsub.f32 %v81, %v660
    %v662 = vand.u32 %v661, 4294901760
    %v663 = vsub.f32 %v661, %v662
    %v664 = vand.u32 %v663, 4294901760
    %665 = vmatpush.msra.mxu0 %v664
    %v666 = vand.u32 %v77, 4294901760
    %v667 = vsub.f32 %v77, %v666
    %v668 = vand.u32 %v667, 4294901760
    %v669 = vsub.f32 %v667, %v668
    %v670 = vand.u32 %v669, 4294901760
    %671 = vmatpush.msra.mxu0 %v670
    %v672 = vand.u32 %v73, 4294901760
    %v673 = vsub.f32 %v73, %v672
    %v674 = vand.u32 %v673, 4294901760
    %v675 = vsub.f32 %v673, %v674
    %v676 = vand.u32 %v675, 4294901760
    %677 = vmatpush.msra.mxu0 %v676
    %v678 = vand.u32 %v69, 4294901760
    %v679 = vsub.f32 %v69, %v678
    %v680 = vand.u32 %v679, 4294901760
    %v681 = vsub.f32 %v679, %v680
    %v682 = vand.u32 %v681, 4294901760
    %683 = vmatpush.msra.mxu0 %v682
    %v684 = vand.u32 %v65, 4294901760
    %v685 = vsub.f32 %v65, %v684
    %v686 = vand.u32 %v685, 4294901760
    %v687 = vsub.f32 %v685, %v686
    %v688 = vand.u32 %v687, 4294901760
    %689 = vmatpush.msra.mxu0 %v688
    %v690 = vand.u32 %v61, 4294901760
    %v691 = vsub.f32 %v61, %v690
    %v692 = vand.u32 %v691, 4294901760
    %v693 = vsub.f32 %v691, %v692
    %v694 = vand.u32 %v693, 4294901760
    %695 = vmatpush.msra.mxu0 %v694
    %v696 = vand.u32 %v57, 4294901760
    %v697 = vsub.f32 %v57, %v696
    %v698 = vand.u32 %v697, 4294901760
    %v699 = vsub.f32 %v697, %v698
    %v700 = vand.u32 %v699, 4294901760
    %701 = vmatpush.msra.mxu0 %v700
    %v702 = vand.u32 %v53, 4294901760
    %v703 = vsub.f32 %v53, %v702
    %v704 = vand.u32 %v703, 4294901760
    %v705 = vsub.f32 %v703, %v704
    %v706 = vand.u32 %v705, 4294901760
    %707 = vmatpush.msra.mxu0 %v706
    %v708 = vand.u32 %v86, 4294901760
    %709 = vmatmul.f32.gmra.mxu0 %v708
    %v710 = vpop.f32.mrf.mxu0
    %v711 = vadd.f32 %v594, %v710
    %v712 = vand.u32 %v89, 4294901760
    %713 = vmatmul.f32.gmra.mxu0 %v712
    %v714 = vpop.f32.mrf.mxu0
    %v715 = vadd.f32 %v602, %v714
    %v716 = vand.u32 %v92, 4294901760
    %717 = vmatmul.f32.gmra.mxu0 %v716
    %v718 = vpop.f32.mrf.mxu0
    %v719 = vadd.f32 %v610, %v718
    %v720 = vand.u32 %v95, 4294901760
    %721 = vmatmul.f32.gmra.mxu0 %v720
    %v722 = vpop.f32.mrf.mxu0
    %v723 = vadd.f32 %v618, %v722
    %v724 = vand.u32 %v98, 4294901760
    %725 = vmatmul.f32.gmra.mxu0 %v724
    %v726 = vpop.f32.mrf.mxu0
    %v727 = vadd.f32 %v626, %v726
    %v728 = vand.u32 %v101, 4294901760
    %729 = vmatmul.f32.gmra.mxu0 %v728
    %v730 = vpop.f32.mrf.mxu0
    %v731 = vadd.f32 %v634, %v730
    %v732 = vand.u32 %v104, 4294901760
    %733 = vmatmul.f32.gmra.mxu0 %v732
    %v734 = vpop.f32.mrf.mxu0
    %v735 = vadd.f32 %v642, %v734
    %v736 = vand.u32 %v107, 4294901760
    %737 = vmatmul.f32.gmra.mxu0 %v736
    %v738 = vpop.f32.mrf.mxu0
    %v739 = vadd.f32 %v650, %v738
    %740 = vdwg.mxu0
    %741 = vmatpush.msra.mxu0 0.0
    %742 = vmatpush.msra.mxu0 0.0
    %743 = vmatpush.msra.mxu0 0.0
    %744 = vmatpush.msra.mxu0 0.0
    %745 = vmatpush.msra.mxu0 0.0
    %746 = vmatpush.msra.mxu0 0.0
    %747 = vmatpush.msra.mxu0 0.0
    %748 = vmatpush.msra.mxu0 0.0
    %v749 = vand.u32 %v81, 4294901760
    %v750 = vsub.f32 %v81, %v749
    %751 = vmatpush.msra.mxu0 %v750
    %v752 = vand.u32 %v77, 4294901760
    %v753 = vsub.f32 %v77, %v752
    %754 = vmatpush.msra.mxu0 %v753
    %v755 = vand.u32 %v73, 4294901760
    %v756 = vsub.f32 %v73, %v755
    %757 = vmatpush.msra.mxu0 %v756
    %v758 = vand.u32 %v69, 4294901760
    %v759 = vsub.f32 %v69, %v758
    %760 = vmatpush.msra.mxu0 %v759
    %v761 = vand.u32 %v65, 4294901760
    %v762 = vsub.f32 %v65, %v761
    %763 = vmatpush.msra.mxu0 %v762
    %v764 = vand.u32 %v61, 4294901760
    %v765 = vsub.f32 %v61, %v764
    %766 = vmatpush.msra.mxu0 %v765
    %v767 = vand.u32 %v57, 4294901760
    %v768 = vsub.f32 %v57, %v767
    %769 = vmatpush.msra.mxu0 %v768
    %v770 = vand.u32 %v53, 4294901760
    %v771 = vsub.f32 %v53, %v770
    %772 = vmatpush.msra.mxu0 %v771
    %v773 = vand.u32 %v86, 4294901760
    %v774 = vsub.f32 %v86, %v773
    %775 = vmatmul.f32.gmra.mxu0 %v774
    %v776 = vpop.f32.mrf.mxu0
    %v777 = vadd.f32 %v711, %v776
    %v778 = vand.u32 %v89, 4294901760
    %v779 = vsub.f32 %v89, %v778
    %780 = vmatmul.f32.gmra.mxu0 %v779
    %v781 = vpop.f32.mrf.mxu0
    %v782 = vadd.f32 %v715, %v781
    %v783 = vand.u32 %v92, 4294901760
    %v784 = vsub.f32 %v92, %v783
    %785 = vmatmul.f32.gmra.mxu0 %v784
    %v786 = vpop.f32.mrf.mxu0
    %v787 = vadd.f32 %v719, %v786
    %v788 = vand.u32 %v95, 4294901760
    %v789 = vsub.f32 %v95, %v788
    %790 = vmatmul.f32.gmra.mxu0 %v789
    %v791 = vpop.f32.mrf.mxu0
    %v792 = vadd.f32 %v723, %v791
    %v793 = vand.u32 %v98, 4294901760
    %v794 = vsub.f32 %v98, %v793
    %795 = vmatmul.f32.gmra.mxu0 %v794
    %v796 = vpop.f32.mrf.mxu0
    %v797 = vadd.f32 %v727, %v796
    %v798 = vand.u32 %v101, 4294901760
    %v799 = vsub.f32 %v101, %v798
    %800 = vmatmul.f32.gmra.mxu0 %v799
    %v801 = vpop.f32.mrf.mxu0
    %v802 = vadd.f32 %v731, %v801
    %v803 = vand.u32 %v104, 4294901760
    %v804 = vsub.f32 %v104, %v803
    %805 = vmatmul.f32.gmra.mxu0 %v804
    %v806 = vpop.f32.mrf.mxu0
    %v807 = vadd.f32 %v735, %v806
    %v808 = vand.u32 %v107, 4294901760
    %v809 = vsub.f32 %v107, %v808
    %810 = vmatmul.f32.gmra.mxu0 %v809
    %v811 = vpop.f32.mrf.mxu0
    %v812 = vadd.f32 %v739, %v811
    %813 = vdwg.mxu0
    %814 = vmatpush.msra.mxu0 0.0
    %815 = vmatpush.msra.mxu0 0.0
    %816 = vmatpush.msra.mxu0 0.0
    %817 = vmatpush.msra.mxu0 0.0
    %818 = vmatpush.msra.mxu0 0.0
    %819 = vmatpush.msra.mxu0 0.0
    %820 = vmatpush.msra.mxu0 0.0
    %821 = vmatpush.msra.mxu0 0.0
    %v822 = vand.u32 %v81, 4294901760
    %823 = vmatpush.msra.mxu0 %v822
    %v824 = vand.u32 %v77, 4294901760
    %825 = vmatpush.msra.mxu0 %v824
    %v826 = vand.u32 %v73, 4294901760
    %827 = vmatpush.msra.mxu0 %v826
    %v828 = vand.u32 %v69, 4294901760
    %829 = vmatpush.msra.mxu0 %v828
    %v830 = vand.u32 %v65, 4294901760
    %831 = vmatpush.msra.mxu0 %v830
    %v832 = vand.u32 %v61, 4294901760
    %833 = vmatpush.msra.mxu0 %v832
    %v834 = vand.u32 %v57, 4294901760
    %835 = vmatpush.msra.mxu0 %v834
    %v836 = vand.u32 %v53, 4294901760
    %837 = vmatpush.msra.mxu0 %v836
    %v838 = vand.u32 %v86, 4294901760
    %v839 = vsub.f32 %v86, %v838
    %v840 = vand.u32 %v839, 4294901760
    %841 = vmatmul.f32.gmra.mxu0 %v840
    %v842 = vpop.f32.mrf.mxu0
    %v843 = vadd.f32 %v777, %v842
    %v844 = vand.u32 %v89, 4294901760
    %v845 = vsub.f32 %v89, %v844
    %v846 = vand.u32 %v845, 4294901760
    %847 = vmatmul.f32.gmra.mxu0 %v846
    %v848 = vpop.f32.mrf.mxu0
    %v849 = vadd.f32 %v782, %v848
    %v850 = vand.u32 %v92, 4294901760
    %v851 = vsub.f32 %v92, %v850
    %v852 = vand.u32 %v851, 4294901760
    %853 = vmatmul.f32.gmra.mxu0 %v852
    %v854 = vpop.f32.mrf.mxu0
    %v855 = vadd.f32 %v787, %v854
    %v856 = vand.u32 %v95, 4294901760
    %v857 = vsub.f32 %v95, %v856
    %v858 = vand.u32 %v857, 4294901760
    %859 = vmatmul.f32.gmra.mxu0 %v858
    %v860 = vpop.f32.mrf.mxu0
    %v861 = vadd.f32 %v792, %v860
    %v862 = vand.u32 %v98, 4294901760
    %v863 = vsub.f32 %v98, %v862
    %v864 = vand.u32 %v863, 4294901760
    %865 = vmatmul.f32.gmra.mxu0 %v864
    %v866 = vpop.f32.mrf.mxu0
    %v867 = vadd.f32 %v797, %v866
    %v868 = vand.u32 %v101, 4294901760
    %v869 = vsub.f32 %v101, %v868
    %v870 = vand.u32 %v869, 4294901760
    %871 = vmatmul.f32.gmra.mxu0 %v870
    %v872 = vpop.f32.mrf.mxu0
    %v873 = vadd.f32 %v802, %v872
    %v874 = vand.u32 %v104, 4294901760
    %v875 = vsub.f32 %v104, %v874
    %v876 = vand.u32 %v875, 4294901760
    %877 = vmatmul.f32.gmra.mxu0 %v876
    %v878 = vpop.f32.mrf.mxu0
    %v879 = vadd.f32 %v807, %v878
    %v880 = vand.u32 %v107, 4294901760
    %v881 = vsub.f32 %v107, %v880
    %v882 = vand.u32 %v881, 4294901760
    %883 = vmatmul.f32.gmra.mxu0 %v882
    %v884 = vpop.f32.mrf.mxu0
    %v885 = vadd.f32 %v812, %v884
    %886 = vdwg.mxu0
    %887 = vmatpush.msra.mxu0 0.0
    %888 = vmatpush.msra.mxu0 0.0
    %889 = vmatpush.msra.mxu0 0.0
    %890 = vmatpush.msra.mxu0 0.0
    %891 = vmatpush.msra.mxu0 0.0
    %892 = vmatpush.msra.mxu0 0.0
    %893 = vmatpush.msra.mxu0 0.0
    %894 = vmatpush.msra.mxu0 0.0
    %v895 = vand.u32 %v81, 4294901760
    %v896 = vsub.f32 %v81, %v895
    %v897 = vand.u32 %v896, 4294901760
    %898 = vmatpush.msra.mxu0 %v897
    %v899 = vand.u32 %v77, 4294901760
    %v900 = vsub.f32 %v77, %v899
    %v901 = vand.u32 %v900, 4294901760
    %902 = vmatpush.msra.mxu0 %v901
    %v903 = vand.u32 %v73, 4294901760
    %v904 = vsub.f32 %v73, %v903
    %v905 = vand.u32 %v904, 4294901760
    %906 = vmatpush.msra.mxu0 %v905
    %v907 = vand.u32 %v69, 4294901760
    %v908 = vsub.f32 %v69, %v907
    %v909 = vand.u32 %v908, 4294901760
    %910 = vmatpush.msra.mxu0 %v909
    %v911 = vand.u32 %v65, 4294901760
    %v912 = vsub.f32 %v65, %v911
    %v913 = vand.u32 %v912, 4294901760
    %914 = vmatpush.msra.mxu0 %v913
    %v915 = vand.u32 %v61, 4294901760
    %v916 = vsub.f32 %v61, %v915
    %v917 = vand.u32 %v916, 4294901760
    %918 = vmatpush.msra.mxu0 %v917
    %v919 = vand.u32 %v57, 4294901760
    %v920 = vsub.f32 %v57, %v919
    %v921 = vand.u32 %v920, 4294901760
    %922 = vmatpush.msra.mxu0 %v921
    %v923 = vand.u32 %v53, 4294901760
    %v924 = vsub.f32 %v53, %v923
    %v925 = vand.u32 %v924, 4294901760
    %926 = vmatpush.msra.mxu0 %v925
    %v927 = vand.u32 %v86, 4294901760
    %928 = vmatmul.f32.gmra.mxu0 %v927
    %v929 = vpop.f32.mrf.mxu0
    %v930 = vadd.f32 %v843, %v929
    %v931 = vand.u32 %v89, 4294901760
    %932 = vmatmul.f32.gmra.mxu0 %v931
    %v933 = vpop.f32.mrf.mxu0
    %v934 = vadd.f32 %v849, %v933
    %v935 = vand.u32 %v92, 4294901760
    %936 = vmatmul.f32.gmra.mxu0 %v935
    %v937 = vpop.f32.mrf.mxu0
    %v938 = vadd.f32 %v855, %v937
    %v939 = vand.u32 %v95, 4294901760
    %940 = vmatmul.f32.gmra.mxu0 %v939
    %v941 = vpop.f32.mrf.mxu0
    %v942 = vadd.f32 %v861, %v941
    %v943 = vand.u32 %v98, 4294901760
    %944 = vmatmul.f32.gmra.mxu0 %v943
    %v945 = vpop.f32.mrf.mxu0
    %v946 = vadd.f32 %v867, %v945
    %v947 = vand.u32 %v101, 4294901760
    %948 = vmatmul.f32.gmra.mxu0 %v947
    %v949 = vpop.f32.mrf.mxu0
    %v950 = vadd.f32 %v873, %v949
    %v951 = vand.u32 %v104, 4294901760
    %952 = vmatmul.f32.gmra.mxu0 %v951
    %v953 = vpop.f32.mrf.mxu0
    %v954 = vadd.f32 %v879, %v953
    %v955 = vand.u32 %v107, 4294901760
    %956 = vmatmul.f32.gmra.mxu0 %v955
    %v957 = vpop.f32.mrf.mxu0
    %v958 = vadd.f32 %v885, %v957
    %959 = vdwg.mxu0
    %960 = vmatpush.msra.mxu0 0.0
    %961 = vmatpush.msra.mxu0 0.0
    %962 = vmatpush.msra.mxu0 0.0
    %963 = vmatpush.msra.mxu0 0.0
    %964 = vmatpush.msra.mxu0 0.0
    %965 = vmatpush.msra.mxu0 0.0
    %966 = vmatpush.msra.mxu0 0.0
    %967 = vmatpush.msra.mxu0 0.0
    %v968 = vand.u32 %v81, 4294901760
    %969 = vmatpush.msra.mxu0 %v968
    %v970 = vand.u32 %v77, 4294901760
    %971 = vmatpush.msra.mxu0 %v970
    %v972 = vand.u32 %v73, 4294901760
    %973 = vmatpush.msra.mxu0 %v972
    %v974 = vand.u32 %v69, 4294901760
    %975 = vmatpush.msra.mxu0 %v974
    %v976 = vand.u32 %v65, 4294901760
    %977 = vmatpush.msra.mxu0 %v976
    %v978 = vand.u32 %v61, 4294901760
    %979 = vmatpush.msra.mxu0 %v978
    %v980 = vand.u32 %v57, 4294901760
    %981 = vmatpush.msra.mxu0 %v980
    %v982 = vand.u32 %v53, 4294901760
    %983 = vmatpush.msra.mxu0 %v982
    %v984 = vand.u32 %v86, 4294901760
    %985 = vmatmul.f32.gmra.mxu0 %v984
    %v986 = vpop.f32.mrf.mxu0
    %v987 = vadd.f32 %v930, %v986
    %v988 = vand.u32 %v89, 4294901760
    %989 = vmatmul.f32.gmra.mxu0 %v988
    %v990 = vpop.f32.mrf.mxu0
    %v991 = vadd.f32 %v934, %v990
    %v992 = vand.u32 %v92, 4294901760
    %993 = vmatmul.f32.gmra.mxu0 %v992
    %v994 = vpop.f32.mrf.mxu0
    %v995 = vadd.f32 %v938, %v994
    %v996 = vand.u32 %v95, 4294901760
    %997 = vmatmul.f32.gmra.mxu0 %v996
    %v998 = vpop.f32.mrf.mxu0
    %v999 = vadd.f32 %v942, %v998
    %v1000 = vand.u32 %v98, 4294901760
    %1001 = vmatmul.f32.gmra.mxu0 %v1000
    %v1002 = vpop.f32.mrf.mxu0
    %v1003 = vadd.f32 %v946, %v1002
    %v1004 = vand.u32 %v101, 4294901760
    %1005 = vmatmul.f32.gmra.mxu0 %v1004
    %v1006 = vpop.f32.mrf.mxu0
    %v1007 = vadd.f32 %v950, %v1006
    %v1008 = vand.u32 %v104, 4294901760
    %1009 = vmatmul.f32.gmra.mxu0 %v1008
    %v1010 = vpop.f32.mrf.mxu0
    %v1011 = vadd.f32 %v954, %v1010
    %v1012 = vand.u32 %v107, 4294901760
    %1013 = vmatmul.f32.gmra.mxu0 %v1012
    %v1014 = vpop.f32.mrf.mxu0
    %v1015 = vadd.f32 %v958, %v1014
    %1016 = vdwg.mxu0
    %1017 = vmatpush.msra.mxu0 0.0
    %1018 = vmatpush.msra.mxu0 0.0
    %1019 = vmatpush.msra.mxu0 0.0
    %1020 = vmatpush.msra.mxu0 0.0
    %1021 = vmatpush.msra.mxu0 0.0
    %1022 = vmatpush.msra.mxu0 0.0
    %1023 = vmatpush.msra.mxu0 0.0
    %1024 = vmatpush.msra.mxu0 0.0
    %v1025 = vand.u32 %v82, 4294901760
    %1026 = vmatpush.msra.mxu0 %v1025
    %v1027 = vand.u32 %v78, 4294901760
    %1028 = vmatpush.msra.mxu0 %v1027
    %v1029 = vand.u32 %v74, 4294901760
    %1030 = vmatpush.msra.mxu0 %v1029
    %v1031 = vand.u32 %v70, 4294901760
    %1032 = vmatpush.msra.mxu0 %v1031
    %v1033 = vand.u32 %v66, 4294901760
    %1034 = vmatpush.msra.mxu0 %v1033
    %v1035 = vand.u32 %v62, 4294901760
    %1036 = vmatpush.msra.mxu0 %v1035
    %v1037 = vand.u32 %v58, 4294901760
    %1038 = vmatpush.msra.mxu0 %v1037
    %v1039 = vand.u32 %v54, 4294901760
    %1040 = vmatpush.msra.mxu0 %v1039
    %v1041 = vand.u32 %v86, 4294901760
    %v1042 = vsub.f32 %v86, %v1041
    %v1043 = vand.u32 %v1042, 4294901760
    %v1044 = vsub.f32 %v1042, %v1043
    %v1045 = vand.u32 %v1044, 4294901760
    %1046 = vmatmul.f32.gmra.mxu0 %v1045
    %v1047 = vpop.f32.mrf.mxu0
    %v1048 = vadd.f32 0.0, %v1047
    %v1049 = vand.u32 %v89, 4294901760
    %v1050 = vsub.f32 %v89, %v1049
    %v1051 = vand.u32 %v1050, 4294901760
    %v1052 = vsub.f32 %v1050, %v1051
    %v1053 = vand.u32 %v1052, 4294901760
    %1054 = vmatmul.f32.gmra.mxu0 %v1053
    %v1055 = vpop.f32.mrf.mxu0
    %v1056 = vadd.f32 0.0, %v1055
    %v1057 = vand.u32 %v92, 4294901760
    %v1058 = vsub.f32 %v92, %v1057
    %v1059 = vand.u32 %v1058, 4294901760
    %v1060 = vsub.f32 %v1058, %v1059
    %v1061 = vand.u32 %v1060, 4294901760
    %1062 = vmatmul.f32.gmra.mxu0 %v1061
    %v1063 = vpop.f32.mrf.mxu0
    %v1064 = vadd.f32 0.0, %v1063
    %v1065 = vand.u32 %v95, 4294901760
    %v1066 = vsub.f32 %v95, %v1065
    %v1067 = vand.u32 %v1066, 4294901760
    %v1068 = vsub.f32 %v1066, %v1067
    %v1069 = vand.u32 %v1068, 4294901760
    %1070 = vmatmul.f32.gmra.mxu0 %v1069
    %v1071 = vpop.f32.mrf.mxu0
    %v1072 = vadd.f32 0.0, %v1071
    %v1073 = vand.u32 %v98, 4294901760
    %v1074 = vsub.f32 %v98, %v1073
    %v1075 = vand.u32 %v1074, 4294901760
    %v1076 = vsub.f32 %v1074, %v1075
    %v1077 = vand.u32 %v1076, 4294901760
    %1078 = vmatmul.f32.gmra.mxu0 %v1077
    %v1079 = vpop.f32.mrf.mxu0
    %v1080 = vadd.f32 0.0, %v1079
    %v1081 = vand.u32 %v101, 4294901760
    %v1082 = vsub.f32 %v101, %v1081
    %v1083 = vand.u32 %v1082, 4294901760
    %v1084 = vsub.f32 %v1082, %v1083
    %v1085 = vand.u32 %v1084, 4294901760
    %1086 = vmatmul.f32.gmra.mxu0 %v1085
    %v1087 = vpop.f32.mrf.mxu0
    %v1088 = vadd.f32 0.0, %v1087
    %v1089 = vand.u32 %v104, 4294901760
    %v1090 = vsub.f32 %v104, %v1089
    %v1091 = vand.u32 %v1090, 4294901760
    %v1092 = vsub.f32 %v1090, %v1091
    %v1093 = vand.u32 %v1092, 4294901760
    %1094 = vmatmul.f32.gmra.mxu0 %v1093
    %v1095 = vpop.f32.mrf.mxu0
    %v1096 = vadd.f32 0.0, %v1095
    %v1097 = vand.u32 %v107, 4294901760
    %v1098 = vsub.f32 %v107, %v1097
    %v1099 = vand.u32 %v1098, 4294901760
    %v1100 = vsub.f32 %v1098, %v1099
    %v1101 = vand.u32 %v1100, 4294901760
    %1102 = vmatmul.f32.gmra.mxu0 %v1101
    %v1103 = vpop.f32.mrf.mxu0
    %v1104 = vadd.f32 0.0, %v1103
    %1105 = vdwg.mxu0
    %1106 = vmatpush.msra.mxu0 0.0
    %1107 = vmatpush.msra.mxu0 0.0
    %1108 = vmatpush.msra.mxu0 0.0
    %1109 = vmatpush.msra.mxu0 0.0
    %1110 = vmatpush.msra.mxu0 0.0
    %1111 = vmatpush.msra.mxu0 0.0
    %1112 = vmatpush.msra.mxu0 0.0
    %1113 = vmatpush.msra.mxu0 0.0
    %v1114 = vand.u32 %v82, 4294901760
    %v1115 = vsub.f32 %v82, %v1114
    %v1116 = vand.u32 %v1115, 4294901760
    %v1117 = vsub.f32 %v1115, %v1116
    %v1118 = vand.u32 %v1117, 4294901760
    %1119 = vmatpush.msra.mxu0 %v1118
    %v1120 = vand.u32 %v78, 4294901760
    %v1121 = vsub.f32 %v78, %v1120
    %v1122 = vand.u32 %v1121, 4294901760
    %v1123 = vsub.f32 %v1121, %v1122
    %v1124 = vand.u32 %v1123, 4294901760
    %1125 = vmatpush.msra.mxu0 %v1124
    %v1126 = vand.u32 %v74, 4294901760
    %v1127 = vsub.f32 %v74, %v1126
    %v1128 = vand.u32 %v1127, 4294901760
    %v1129 = vsub.f32 %v1127, %v1128
    %v1130 = vand.u32 %v1129, 4294901760
    %1131 = vmatpush.msra.mxu0 %v1130
    %v1132 = vand.u32 %v70, 4294901760
    %v1133 = vsub.f32 %v70, %v1132
    %v1134 = vand.u32 %v1133, 4294901760
    %v1135 = vsub.f32 %v1133, %v1134
    %v1136 = vand.u32 %v1135, 4294901760
    %1137 = vmatpush.msra.mxu0 %v1136
    %v1138 = vand.u32 %v66, 4294901760
    %v1139 = vsub.f32 %v66, %v1138
    %v1140 = vand.u32 %v1139, 4294901760
    %v1141 = vsub.f32 %v1139, %v1140
    %v1142 = vand.u32 %v1141, 4294901760
    %1143 = vmatpush.msra.mxu0 %v1142
    %v1144 = vand.u32 %v62, 4294901760
    %v1145 = vsub.f32 %v62, %v1144
    %v1146 = vand.u32 %v1145, 4294901760
    %v1147 = vsub.f32 %v1145, %v1146
    %v1148 = vand.u32 %v1147, 4294901760
    %1149 = vmatpush.msra.mxu0 %v1148
    %v1150 = vand.u32 %v58, 4294901760
    %v1151 = vsub.f32 %v58, %v1150
    %v1152 = vand.u32 %v1151, 4294901760
    %v1153 = vsub.f32 %v1151, %v1152
    %v1154 = vand.u32 %v1153, 4294901760
    %1155 = vmatpush.msra.mxu0 %v1154
    %v1156 = vand.u32 %v54, 4294901760
    %v1157 = vsub.f32 %v54, %v1156
    %v1158 = vand.u32 %v1157, 4294901760
    %v1159 = vsub.f32 %v1157, %v1158
    %v1160 = vand.u32 %v1159, 4294901760
    %1161 = vmatpush.msra.mxu0 %v1160
    %v1162 = vand.u32 %v86, 4294901760
    %1163 = vmatmul.f32.gmra.mxu0 %v1162
    %v1164 = vpop.f32.mrf.mxu0
    %v1165 = vadd.f32 %v1048, %v1164
    %v1166 = vand.u32 %v89, 4294901760
    %1167 = vmatmul.f32.gmra.mxu0 %v1166
    %v1168 = vpop.f32.mrf.mxu0
    %v1169 = vadd.f32 %v1056, %v1168
    %v1170 = vand.u32 %v92, 4294901760
    %1171 = vmatmul.f32.gmra.mxu0 %v1170
    %v1172 = vpop.f32.mrf.mxu0
    %v1173 = vadd.f32 %v1064, %v1172
    %v1174 = vand.u32 %v95, 4294901760
    %1175 = vmatmul.f32.gmra.mxu0 %v1174
    %v1176 = vpop.f32.mrf.mxu0
    %v1177 = vadd.f32 %v1072, %v1176
    %v1178 = vand.u32 %v98, 4294901760
    %1179 = vmatmul.f32.gmra.mxu0 %v1178
    %v1180 = vpop.f32.mrf.mxu0
    %v1181 = vadd.f32 %v1080, %v1180
    %v1182 = vand.u32 %v101, 4294901760
    %1183 = vmatmul.f32.gmra.mxu0 %v1182
    %v1184 = vpop.f32.mrf.mxu0
    %v1185 = vadd.f32 %v1088, %v1184
    %v1186 = vand.u32 %v104, 4294901760
    %1187 = vmatmul.f32.gmra.mxu0 %v1186
    %v1188 = vpop.f32.mrf.mxu0
    %v1189 = vadd.f32 %v1096, %v1188
    %v1190 = vand.u32 %v107, 4294901760
    %1191 = vmatmul.f32.gmra.mxu0 %v1190
    %v1192 = vpop.f32.mrf.mxu0
    %v1193 = vadd.f32 %v1104, %v1192
    %1194 = vdwg.mxu0
    %1195 = vmatpush.msra.mxu0 0.0
    %1196 = vmatpush.msra.mxu0 0.0
    %1197 = vmatpush.msra.mxu0 0.0
    %1198 = vmatpush.msra.mxu0 0.0
    %1199 = vmatpush.msra.mxu0 0.0
    %1200 = vmatpush.msra.mxu0 0.0
    %1201 = vmatpush.msra.mxu0 0.0
    %1202 = vmatpush.msra.mxu0 0.0
    %v1203 = vand.u32 %v82, 4294901760
    %v1204 = vsub.f32 %v82, %v1203
    %1205 = vmatpush.msra.mxu0 %v1204
    %v1206 = vand.u32 %v78, 4294901760
    %v1207 = vsub.f32 %v78, %v1206
    %1208 = vmatpush.msra.mxu0 %v1207
    %v1209 = vand.u32 %v74, 4294901760
    %v1210 = vsub.f32 %v74, %v1209
    %1211 = vmatpush.msra.mxu0 %v1210
    %v1212 = vand.u32 %v70, 4294901760
    %v1213 = vsub.f32 %v70, %v1212
    %1214 = vmatpush.msra.mxu0 %v1213
    %v1215 = vand.u32 %v66, 4294901760
    %v1216 = vsub.f32 %v66, %v1215
    %1217 = vmatpush.msra.mxu0 %v1216
    %v1218 = vand.u32 %v62, 4294901760
    %v1219 = vsub.f32 %v62, %v1218
    %1220 = vmatpush.msra.mxu0 %v1219
    %v1221 = vand.u32 %v58, 4294901760
    %v1222 = vsub.f32 %v58, %v1221
    %1223 = vmatpush.msra.mxu0 %v1222
    %v1224 = vand.u32 %v54, 4294901760
    %v1225 = vsub.f32 %v54, %v1224
    %1226 = vmatpush.msra.mxu0 %v1225
    %v1227 = vand.u32 %v86, 4294901760
    %v1228 = vsub.f32 %v86, %v1227
    %1229 = vmatmul.f32.gmra.mxu0 %v1228
    %v1230 = vpop.f32.mrf.mxu0
    %v1231 = vadd.f32 %v1165, %v1230
    %v1232 = vand.u32 %v89, 4294901760
    %v1233 = vsub.f32 %v89, %v1232
    %1234 = vmatmul.f32.gmra.mxu0 %v1233
    %v1235 = vpop.f32.mrf.mxu0
    %v1236 = vadd.f32 %v1169, %v1235
    %v1237 = vand.u32 %v92, 4294901760
    %v1238 = vsub.f32 %v92, %v1237
    %1239 = vmatmul.f32.gmra.mxu0 %v1238
    %v1240 = vpop.f32.mrf.mxu0
    %v1241 = vadd.f32 %v1173, %v1240
    %v1242 = vand.u32 %v95, 4294901760
    %v1243 = vsub.f32 %v95, %v1242
    %1244 = vmatmul.f32.gmra.mxu0 %v1243
    %v1245 = vpop.f32.mrf.mxu0
    %v1246 = vadd.f32 %v1177, %v1245
    %v1247 = vand.u32 %v98, 4294901760
    %v1248 = vsub.f32 %v98, %v1247
    %1249 = vmatmul.f32.gmra.mxu0 %v1248
    %v1250 = vpop.f32.mrf.mxu0
    %v1251 = vadd.f32 %v1181, %v1250
    %v1252 = vand.u32 %v101, 4294901760
    %v1253 = vsub.f32 %v101, %v1252
    %1254 = vmatmul.f32.gmra.mxu0 %v1253
    %v1255 = vpop.f32.mrf.mxu0
    %v1256 = vadd.f32 %v1185, %v1255
    %v1257 = vand.u32 %v104, 4294901760
    %v1258 = vsub.f32 %v104, %v1257
    %1259 = vmatmul.f32.gmra.mxu0 %v1258
    %v1260 = vpop.f32.mrf.mxu0
    %v1261 = vadd.f32 %v1189, %v1260
    %v1262 = vand.u32 %v107, 4294901760
    %v1263 = vsub.f32 %v107, %v1262
    %1264 = vmatmul.f32.gmra.mxu0 %v1263
    %v1265 = vpop.f32.mrf.mxu0
    %v1266 = vadd.f32 %v1193, %v1265
    %1267 = vdwg.mxu0
    %1268 = vmatpush.msra.mxu0 0.0
    %1269 = vmatpush.msra.mxu0 0.0
    %1270 = vmatpush.msra.mxu0 0.0
    %1271 = vmatpush.msra.mxu0 0.0
    %1272 = vmatpush.msra.mxu0 0.0
    %1273 = vmatpush.msra.mxu0 0.0
    %1274 = vmatpush.msra.mxu0 0.0
    %1275 = vmatpush.msra.mxu0 0.0
    %v1276 = vand.u32 %v82, 4294901760
    %1277 = vmatpush.msra.mxu0 %v1276
    %v1278 = vand.u32 %v78, 4294901760
    %1279 = vmatpush.msra.mxu0 %v1278
    %v1280 = vand.u32 %v74, 4294901760
    %1281 = vmatpush.msra.mxu0 %v1280
    %v1282 = vand.u32 %v70, 4294901760
    %1283 = vmatpush.msra.mxu0 %v1282
    %v1284 = vand.u32 %v66, 4294901760
    %1285 = vmatpush.msra.mxu0 %v1284
    %v1286 = vand.u32 %v62, 4294901760
    %1287 = vmatpush.msra.mxu0 %v1286
    %v1288 = vand.u32 %v58, 4294901760
    %1289 = vmatpush.msra.mxu0 %v1288
    %v1290 = vand.u32 %v54, 4294901760
    %1291 = vmatpush.msra.mxu0 %v1290
    %v1292 = vand.u32 %v86, 4294901760
    %v1293 = vsub.f32 %v86, %v1292
    %v1294 = vand.u32 %v1293, 4294901760
    %1295 = vmatmul.f32.gmra.mxu0 %v1294
    %v1296 = vpop.f32.mrf.mxu0
    %v1297 = vadd.f32 %v1231, %v1296
    %v1298 = vand.u32 %v89, 4294901760
    %v1299 = vsub.f32 %v89, %v1298
    %v1300 = vand.u32 %v1299, 4294901760
    %1301 = vmatmul.f32.gmra.mxu0 %v1300
    %v1302 = vpop.f32.mrf.mxu0
    %v1303 = vadd.f32 %v1236, %v1302
    %v1304 = vand.u32 %v92, 4294901760
    %v1305 = vsub.f32 %v92, %v1304
    %v1306 = vand.u32 %v1305, 4294901760
    %1307 = vmatmul.f32.gmra.mxu0 %v1306
    %v1308 = vpop.f32.mrf.mxu0
    %v1309 = vadd.f32 %v1241, %v1308
    %v1310 = vand.u32 %v95, 4294901760
    %v1311 = vsub.f32 %v95, %v1310
    %v1312 = vand.u32 %v1311, 4294901760
    %1313 = vmatmul.f32.gmra.mxu0 %v1312
    %v1314 = vpop.f32.mrf.mxu0
    %v1315 = vadd.f32 %v1246, %v1314
    %v1316 = vand.u32 %v98, 4294901760
    %v1317 = vsub.f32 %v98, %v1316
    %v1318 = vand.u32 %v1317, 4294901760
    %1319 = vmatmul.f32.gmra.mxu0 %v1318
    %v1320 = vpop.f32.mrf.mxu0
    %v1321 = vadd.f32 %v1251, %v1320
    %v1322 = vand.u32 %v101, 4294901760
    %v1323 = vsub.f32 %v101, %v1322
    %v1324 = vand.u32 %v1323, 4294901760
    %1325 = vmatmul.f32.gmra.mxu0 %v1324
    %v1326 = vpop.f32.mrf.mxu0
    %v1327 = vadd.f32 %v1256, %v1326
    %v1328 = vand.u32 %v104, 4294901760
    %v1329 = vsub.f32 %v104, %v1328
    %v1330 = vand.u32 %v1329, 4294901760
    %1331 = vmatmul.f32.gmra.mxu0 %v1330
    %v1332 = vpop.f32.mrf.mxu0
    %v1333 = vadd.f32 %v1261, %v1332
    %v1334 = vand.u32 %v107, 4294901760
    %v1335 = vsub.f32 %v107, %v1334
    %v1336 = vand.u32 %v1335, 4294901760
    %1337 = vmatmul.f32.gmra.mxu0 %v1336
    %v1338 = vpop.f32.mrf.mxu0
    %v1339 = vadd.f32 %v1266, %v1338
    %1340 = vdwg.mxu0
    %1341 = vmatpush.msra.mxu0 0.0
    %1342 = vmatpush.msra.mxu0 0.0
    %1343 = vmatpush.msra.mxu0 0.0
    %1344 = vmatpush.msra.mxu0 0.0
    %1345 = vmatpush.msra.mxu0 0.0
    %1346 = vmatpush.msra.mxu0 0.0
    %1347 = vmatpush.msra.mxu0 0.0
    %1348 = vmatpush.msra.mxu0 0.0
    %v1349 = vand.u32 %v82, 4294901760
    %v1350 = vsub.f32 %v82, %v1349
    %v1351 = vand.u32 %v1350, 4294901760
    %1352 = vmatpush.msra.mxu0 %v1351
    %v1353 = vand.u32 %v78, 4294901760
    %v1354 = vsub.f32 %v78, %v1353
    %v1355 = vand.u32 %v1354, 4294901760
    %1356 = vmatpush.msra.mxu0 %v1355
    %v1357 = vand.u32 %v74, 4294901760
    %v1358 = vsub.f32 %v74, %v1357
    %v1359 = vand.u32 %v1358, 4294901760
    %1360 = vmatpush.msra.mxu0 %v1359
    %v1361 = vand.u32 %v70, 4294901760
    %v1362 = vsub.f32 %v70, %v1361
    %v1363 = vand.u32 %v1362, 4294901760
    %1364 = vmatpush.msra.mxu0 %v1363
    %v1365 = vand.u32 %v66, 4294901760
    %v1366 = vsub.f32 %v66, %v1365
    %v1367 = vand.u32 %v1366, 4294901760
    %1368 = vmatpush.msra.mxu0 %v1367
    %v1369 = vand.u32 %v62, 4294901760
    %v1370 = vsub.f32 %v62, %v1369
    %v1371 = vand.u32 %v1370, 4294901760
    %1372 = vmatpush.msra.mxu0 %v1371
    %v1373 = vand.u32 %v58, 4294901760
    %v1374 = vsub.f32 %v58, %v1373
    %v1375 = vand.u32 %v1374, 4294901760
    %1376 = vmatpush.msra.mxu0 %v1375
    %v1377 = vand.u32 %v54, 4294901760
    %v1378 = vsub.f32 %v54, %v1377
    %v1379 = vand.u32 %v1378, 4294901760
    %1380 = vmatpush.msra.mxu0 %v1379
    %v1381 = vand.u32 %v86, 4294901760
    %1382 = vmatmul.f32.gmra.mxu0 %v1381
    %v1383 = vpop.f32.mrf.mxu0
    %v1384 = vadd.f32 %v1297, %v1383
    %v1385 = vand.u32 %v89, 4294901760
    %1386 = vmatmul.f32.gmra.mxu0 %v1385
    %v1387 = vpop.f32.mrf.mxu0
    %v1388 = vadd.f32 %v1303, %v1387
    %v1389 = vand.u32 %v92, 4294901760
    %1390 = vmatmul.f32.gmra.mxu0 %v1389
    %v1391 = vpop.f32.mrf.mxu0
    %v1392 = vadd.f32 %v1309, %v1391
    %v1393 = vand.u32 %v95, 4294901760
    %1394 = vmatmul.f32.gmra.mxu0 %v1393
    %v1395 = vpop.f32.mrf.mxu0
    %v1396 = vadd.f32 %v1315, %v1395
    %v1397 = vand.u32 %v98, 4294901760
    %1398 = vmatmul.f32.gmra.mxu0 %v1397
    %v1399 = vpop.f32.mrf.mxu0
    %v1400 = vadd.f32 %v1321, %v1399
    %v1401 = vand.u32 %v101, 4294901760
    %1402 = vmatmul.f32.gmra.mxu0 %v1401
    %v1403 = vpop.f32.mrf.mxu0
    %v1404 = vadd.f32 %v1327, %v1403
    %v1405 = vand.u32 %v104, 4294901760
    %1406 = vmatmul.f32.gmra.mxu0 %v1405
    %v1407 = vpop.f32.mrf.mxu0
    %v1408 = vadd.f32 %v1333, %v1407
    %v1409 = vand.u32 %v107, 4294901760
    %1410 = vmatmul.f32.gmra.mxu0 %v1409
    %v1411 = vpop.f32.mrf.mxu0
    %v1412 = vadd.f32 %v1339, %v1411
    %1413 = vdwg.mxu0
    %1414 = vmatpush.msra.mxu0 0.0
    %1415 = vmatpush.msra.mxu0 0.0
    %1416 = vmatpush.msra.mxu0 0.0
    %1417 = vmatpush.msra.mxu0 0.0
    %1418 = vmatpush.msra.mxu0 0.0
    %1419 = vmatpush.msra.mxu0 0.0
    %1420 = vmatpush.msra.mxu0 0.0
    %1421 = vmatpush.msra.mxu0 0.0
    %v1422 = vand.u32 %v82, 4294901760
    %1423 = vmatpush.msra.mxu0 %v1422
    %v1424 = vand.u32 %v78, 4294901760
    %1425 = vmatpush.msra.mxu0 %v1424
    %v1426 = vand.u32 %v74, 4294901760
    %1427 = vmatpush.msra.mxu0 %v1426
    %v1428 = vand.u32 %v70, 4294901760
    %1429 = vmatpush.msra.mxu0 %v1428
    %v1430 = vand.u32 %v66, 4294901760
    %1431 = vmatpush.msra.mxu0 %v1430
    %v1432 = vand.u32 %v62, 4294901760
    %1433 = vmatpush.msra.mxu0 %v1432
    %v1434 = vand.u32 %v58, 4294901760
    %1435 = vmatpush.msra.mxu0 %v1434
    %v1436 = vand.u32 %v54, 4294901760
    %1437 = vmatpush.msra.mxu0 %v1436
    %v1438 = vand.u32 %v86, 4294901760
    %1439 = vmatmul.f32.gmra.mxu0 %v1438
    %v1440 = vpop.f32.mrf.mxu0
    %v1441 = vadd.f32 %v1384, %v1440
    %v1442 = vand.u32 %v89, 4294901760
    %1443 = vmatmul.f32.gmra.mxu0 %v1442
    %v1444 = vpop.f32.mrf.mxu0
    %v1445 = vadd.f32 %v1388, %v1444
    %v1446 = vand.u32 %v92, 4294901760
    %1447 = vmatmul.f32.gmra.mxu0 %v1446
    %v1448 = vpop.f32.mrf.mxu0
    %v1449 = vadd.f32 %v1392, %v1448
    %v1450 = vand.u32 %v95, 4294901760
    %1451 = vmatmul.f32.gmra.mxu0 %v1450
    %v1452 = vpop.f32.mrf.mxu0
    %v1453 = vadd.f32 %v1396, %v1452
    %v1454 = vand.u32 %v98, 4294901760
    %1455 = vmatmul.f32.gmra.mxu0 %v1454
    %v1456 = vpop.f32.mrf.mxu0
    %v1457 = vadd.f32 %v1400, %v1456
    %v1458 = vand.u32 %v101, 4294901760
    %1459 = vmatmul.f32.gmra.mxu0 %v1458
    %v1460 = vpop.f32.mrf.mxu0
    %v1461 = vadd.f32 %v1404, %v1460
    %v1462 = vand.u32 %v104, 4294901760
    %1463 = vmatmul.f32.gmra.mxu0 %v1462
    %v1464 = vpop.f32.mrf.mxu0
    %v1465 = vadd.f32 %v1408, %v1464
    %v1466 = vand.u32 %v107, 4294901760
    %1467 = vmatmul.f32.gmra.mxu0 %v1466
    %v1468 = vpop.f32.mrf.mxu0
    %v1469 = vadd.f32 %v1412, %v1468
    %1470 = vdwg.mxu0
    %1471 = vmatpush.msra.mxu0 0.0
    %1472 = vmatpush.msra.mxu0 0.0
    %1473 = vmatpush.msra.mxu0 0.0
    %1474 = vmatpush.msra.mxu0 0.0
    %1475 = vmatpush.msra.mxu0 0.0
    %1476 = vmatpush.msra.mxu0 0.0
    %1477 = vmatpush.msra.mxu0 0.0
    %1478 = vmatpush.msra.mxu0 0.0
    %v1479 = vand.u32 %v83, 4294901760
    %1480 = vmatpush.msra.mxu0 %v1479
    %v1481 = vand.u32 %v79, 4294901760
    %1482 = vmatpush.msra.mxu0 %v1481
    %v1483 = vand.u32 %v75, 4294901760
    %1484 = vmatpush.msra.mxu0 %v1483
    %v1485 = vand.u32 %v71, 4294901760
    %1486 = vmatpush.msra.mxu0 %v1485
    %v1487 = vand.u32 %v67, 4294901760
    %1488 = vmatpush.msra.mxu0 %v1487
    %v1489 = vand.u32 %v63, 4294901760
    %1490 = vmatpush.msra.mxu0 %v1489
    %v1491 = vand.u32 %v59, 4294901760
    %1492 = vmatpush.msra.mxu0 %v1491
    %v1493 = vand.u32 %v55, 4294901760
    %1494 = vmatpush.msra.mxu0 %v1493
    %v1495 = vand.u32 %v86, 4294901760
    %v1496 = vsub.f32 %v86, %v1495
    %v1497 = vand.u32 %v1496, 4294901760
    %v1498 = vsub.f32 %v1496, %v1497
    %v1499 = vand.u32 %v1498, 4294901760
    %1500 = vmatmul.f32.gmra.mxu0 %v1499
    %v1501 = vpop.f32.mrf.mxu0
    %v1502 = vadd.f32 0.0, %v1501
    %v1503 = vand.u32 %v89, 4294901760
    %v1504 = vsub.f32 %v89, %v1503
    %v1505 = vand.u32 %v1504, 4294901760
    %v1506 = vsub.f32 %v1504, %v1505
    %v1507 = vand.u32 %v1506, 4294901760
    %1508 = vmatmul.f32.gmra.mxu0 %v1507
    %v1509 = vpop.f32.mrf.mxu0
    %v1510 = vadd.f32 0.0, %v1509
    %v1511 = vand.u32 %v92, 4294901760
    %v1512 = vsub.f32 %v92, %v1511
    %v1513 = vand.u32 %v1512, 4294901760
    %v1514 = vsub.f32 %v1512, %v1513
    %v1515 = vand.u32 %v1514, 4294901760
    %1516 = vmatmul.f32.gmra.mxu0 %v1515
    %v1517 = vpop.f32.mrf.mxu0
    %v1518 = vadd.f32 0.0, %v1517
    %v1519 = vand.u32 %v95, 4294901760
    %v1520 = vsub.f32 %v95, %v1519
    %v1521 = vand.u32 %v1520, 4294901760
    %v1522 = vsub.f32 %v1520, %v1521
    %v1523 = vand.u32 %v1522, 4294901760
    %1524 = vmatmul.f32.gmra.mxu0 %v1523
    %v1525 = vpop.f32.mrf.mxu0
    %v1526 = vadd.f32 0.0, %v1525
    %v1527 = vand.u32 %v98, 4294901760
    %v1528 = vsub.f32 %v98, %v1527
    %v1529 = vand.u32 %v1528, 4294901760
    %v1530 = vsub.f32 %v1528, %v1529
    %v1531 = vand.u32 %v1530, 4294901760
    %1532 = vmatmul.f32.gmra.mxu0 %v1531
    %v1533 = vpop.f32.mrf.mxu0
    %v1534 = vadd.f32 0.0, %v1533
    %v1535 = vand.u32 %v101, 4294901760
    %v1536 = vsub.f32 %v101, %v1535
    %v1537 = vand.u32 %v1536, 4294901760
    %v1538 = vsub.f32 %v1536, %v1537
    %v1539 = vand.u32 %v1538, 4294901760
    %1540 = vmatmul.f32.gmra.mxu0 %v1539
    %v1541 = vpop.f32.mrf.mxu0
    %v1542 = vadd.f32 0.0, %v1541
    %v1543 = vand.u32 %v104, 4294901760
    %v1544 = vsub.f32 %v104, %v1543
    %v1545 = vand.u32 %v1544, 4294901760
    %v1546 = vsub.f32 %v1544, %v1545
    %v1547 = vand.u32 %v1546, 4294901760
    %1548 = vmatmul.f32.gmra.mxu0 %v1547
    %v1549 = vpop.f32.mrf.mxu0
    %v1550 = vadd.f32 0.0, %v1549
    %v1551 = vand.u32 %v107, 4294901760
    %v1552 = vsub.f32 %v107, %v1551
    %v1553 = vand.u32 %v1552, 4294901760
    %v1554 = vsub.f32 %v1552, %v1553
    %v1555 = vand.u32 %v1554, 4294901760
    %1556 = vmatmul.f32.gmra.mxu0 %v1555
    %v1557 = vpop.f32.mrf.mxu0
    %v1558 = vadd.f32 0.0, %v1557
    %1559 = vdwg.mxu0
    %1560 = vmatpush.msra.mxu0 0.0
    %1561 = vmatpush.msra.mxu0 0.0
    %1562 = vmatpush.msra.mxu0 0.0
    %1563 = vmatpush.msra.mxu0 0.0
    %1564 = vmatpush.msra.mxu0 0.0
    %1565 = vmatpush.msra.mxu0 0.0
    %1566 = vmatpush.msra.mxu0 0.0
    %1567 = vmatpush.msra.mxu0 0.0
    %v1568 = vand.u32 %v83, 4294901760
    %v1569 = vsub.f32 %v83, %v1568
    %v1570 = vand.u32 %v1569, 4294901760
    %v1571 = vsub.f32 %v1569, %v1570
    %v1572 = vand.u32 %v1571, 4294901760
    %1573 = vmatpush.msra.mxu0 %v1572
    %v1574 = vand.u32 %v79, 4294901760
    %v1575 = vsub.f32 %v79, %v1574
    %v1576 = vand.u32 %v1575, 4294901760
    %v1577 = vsub.f32 %v1575, %v1576
    %v1578 = vand.u32 %v1577, 4294901760
    %1579 = vmatpush.msra.mxu0 %v1578
    %v1580 = vand.u32 %v75, 4294901760
    %v1581 = vsub.f32 %v75, %v1580
    %v1582 = vand.u32 %v1581, 4294901760
    %v1583 = vsub.f32 %v1581, %v1582
    %v1584 = vand.u32 %v1583, 4294901760
    %1585 = vmatpush.msra.mxu0 %v1584
    %v1586 = vand.u32 %v71, 4294901760
    %v1587 = vsub.f32 %v71, %v1586
    %v1588 = vand.u32 %v1587, 4294901760
    %v1589 = vsub.f32 %v1587, %v1588
    %v1590 = vand.u32 %v1589, 4294901760
    %1591 = vmatpush.msra.mxu0 %v1590
    %v1592 = vand.u32 %v67, 4294901760
    %v1593 = vsub.f32 %v67, %v1592
    %v1594 = vand.u32 %v1593, 4294901760
    %v1595 = vsub.f32 %v1593, %v1594
    %v1596 = vand.u32 %v1595, 4294901760
    %1597 = vmatpush.msra.mxu0 %v1596
    %v1598 = vand.u32 %v63, 4294901760
    %v1599 = vsub.f32 %v63, %v1598
    %v1600 = vand.u32 %v1599, 4294901760
    %v1601 = vsub.f32 %v1599, %v1600
    %v1602 = vand.u32 %v1601, 4294901760
    %1603 = vmatpush.msra.mxu0 %v1602
    %v1604 = vand.u32 %v59, 4294901760
    %v1605 = vsub.f32 %v59, %v1604
    %v1606 = vand.u32 %v1605, 4294901760
    %v1607 = vsub.f32 %v1605, %v1606
    %v1608 = vand.u32 %v1607, 4294901760
    %1609 = vmatpush.msra.mxu0 %v1608
    %v1610 = vand.u32 %v55, 4294901760
    %v1611 = vsub.f32 %v55, %v1610
    %v1612 = vand.u32 %v1611, 4294901760
    %v1613 = vsub.f32 %v1611, %v1612
    %v1614 = vand.u32 %v1613, 4294901760
    %1615 = vmatpush.msra.mxu0 %v1614
    %v1616 = vand.u32 %v86, 4294901760
    %1617 = vmatmul.f32.gmra.mxu0 %v1616
    %v1618 = vpop.f32.mrf.mxu0
    %v1619 = vadd.f32 %v1502, %v1618
    %v1620 = vand.u32 %v89, 4294901760
    %1621 = vmatmul.f32.gmra.mxu0 %v1620
    %v1622 = vpop.f32.mrf.mxu0
    %v1623 = vadd.f32 %v1510, %v1622
    %v1624 = vand.u32 %v92, 4294901760
    %1625 = vmatmul.f32.gmra.mxu0 %v1624
    %v1626 = vpop.f32.mrf.mxu0
    %v1627 = vadd.f32 %v1518, %v1626
    %v1628 = vand.u32 %v95, 4294901760
    %1629 = vmatmul.f32.gmra.mxu0 %v1628
    %v1630 = vpop.f32.mrf.mxu0
    %v1631 = vadd.f32 %v1526, %v1630
    %v1632 = vand.u32 %v98, 4294901760
    %1633 = vmatmul.f32.gmra.mxu0 %v1632
    %v1634 = vpop.f32.mrf.mxu0
    %v1635 = vadd.f32 %v1534, %v1634
    %v1636 = vand.u32 %v101, 4294901760
    %1637 = vmatmul.f32.gmra.mxu0 %v1636
    %v1638 = vpop.f32.mrf.mxu0
    %v1639 = vadd.f32 %v1542, %v1638
    %v1640 = vand.u32 %v104, 4294901760
    %1641 = vmatmul.f32.gmra.mxu0 %v1640
    %v1642 = vpop.f32.mrf.mxu0
    %v1643 = vadd.f32 %v1550, %v1642
    %v1644 = vand.u32 %v107, 4294901760
    %1645 = vmatmul.f32.gmra.mxu0 %v1644
    %v1646 = vpop.f32.mrf.mxu0
    %v1647 = vadd.f32 %v1558, %v1646
    %1648 = vdwg.mxu0
    %1649 = vmatpush.msra.mxu0 0.0
    %1650 = vmatpush.msra.mxu0 0.0
    %1651 = vmatpush.msra.mxu0 0.0
    %1652 = vmatpush.msra.mxu0 0.0
    %1653 = vmatpush.msra.mxu0 0.0
    %1654 = vmatpush.msra.mxu0 0.0
    %1655 = vmatpush.msra.mxu0 0.0
    %1656 = vmatpush.msra.mxu0 0.0
    %v1657 = vand.u32 %v83, 4294901760
    %v1658 = vsub.f32 %v83, %v1657
    %1659 = vmatpush.msra.mxu0 %v1658
    %v1660 = vand.u32 %v79, 4294901760
    %v1661 = vsub.f32 %v79, %v1660
    %1662 = vmatpush.msra.mxu0 %v1661
    %v1663 = vand.u32 %v75, 4294901760
    %v1664 = vsub.f32 %v75, %v1663
    %1665 = vmatpush.msra.mxu0 %v1664
    %v1666 = vand.u32 %v71, 4294901760
    %v1667 = vsub.f32 %v71, %v1666
    %1668 = vmatpush.msra.mxu0 %v1667
    %v1669 = vand.u32 %v67, 4294901760
    %v1670 = vsub.f32 %v67, %v1669
    %1671 = vmatpush.msra.mxu0 %v1670
    %v1672 = vand.u32 %v63, 4294901760
    %v1673 = vsub.f32 %v63, %v1672
    %1674 = vmatpush.msra.mxu0 %v1673
    %v1675 = vand.u32 %v59, 4294901760
    %v1676 = vsub.f32 %v59, %v1675
    %1677 = vmatpush.msra.mxu0 %v1676
    %v1678 = vand.u32 %v55, 4294901760
    %v1679 = vsub.f32 %v55, %v1678
    %1680 = vmatpush.msra.mxu0 %v1679
    %v1681 = vand.u32 %v86, 4294901760
    %v1682 = vsub.f32 %v86, %v1681
    %1683 = vmatmul.f32.gmra.mxu0 %v1682
    %v1684 = vpop.f32.mrf.mxu0
    %v1685 = vadd.f32 %v1619, %v1684
    %v1686 = vand.u32 %v89, 4294901760
    %v1687 = vsub.f32 %v89, %v1686
    %1688 = vmatmul.f32.gmra.mxu0 %v1687
    %v1689 = vpop.f32.mrf.mxu0
    %v1690 = vadd.f32 %v1623, %v1689
    %v1691 = vand.u32 %v92, 4294901760
    %v1692 = vsub.f32 %v92, %v1691
    %1693 = vmatmul.f32.gmra.mxu0 %v1692
    %v1694 = vpop.f32.mrf.mxu0
    %v1695 = vadd.f32 %v1627, %v1694
    %v1696 = vand.u32 %v95, 4294901760
    %v1697 = vsub.f32 %v95, %v1696
    %1698 = vmatmul.f32.gmra.mxu0 %v1697
    %v1699 = vpop.f32.mrf.mxu0
    %v1700 = vadd.f32 %v1631, %v1699
    %v1701 = vand.u32 %v98, 4294901760
    %v1702 = vsub.f32 %v98, %v1701
    %1703 = vmatmul.f32.gmra.mxu0 %v1702
    %v1704 = vpop.f32.mrf.mxu0
    %v1705 = vadd.f32 %v1635, %v1704
    %v1706 = vand.u32 %v101, 4294901760
    %v1707 = vsub.f32 %v101, %v1706
    %1708 = vmatmul.f32.gmra.mxu0 %v1707
    %v1709 = vpop.f32.mrf.mxu0
    %v1710 = vadd.f32 %v1639, %v1709
    %v1711 = vand.u32 %v104, 4294901760
    %v1712 = vsub.f32 %v104, %v1711
    %1713 = vmatmul.f32.gmra.mxu0 %v1712
    %v1714 = vpop.f32.mrf.mxu0
    %v1715 = vadd.f32 %v1643, %v1714
    %v1716 = vand.u32 %v107, 4294901760
    %v1717 = vsub.f32 %v107, %v1716
    %1718 = vmatmul.f32.gmra.mxu0 %v1717
    %v1719 = vpop.f32.mrf.mxu0
    %v1720 = vadd.f32 %v1647, %v1719
    %1721 = vdwg.mxu0
    %1722 = vmatpush.msra.mxu0 0.0
    %1723 = vmatpush.msra.mxu0 0.0
    %1724 = vmatpush.msra.mxu0 0.0
    %1725 = vmatpush.msra.mxu0 0.0
    %1726 = vmatpush.msra.mxu0 0.0
    %1727 = vmatpush.msra.mxu0 0.0
    %1728 = vmatpush.msra.mxu0 0.0
    %1729 = vmatpush.msra.mxu0 0.0
    %v1730 = vand.u32 %v83, 4294901760
    %1731 = vmatpush.msra.mxu0 %v1730
    %v1732 = vand.u32 %v79, 4294901760
    %1733 = vmatpush.msra.mxu0 %v1732
    %v1734 = vand.u32 %v75, 4294901760
    %1735 = vmatpush.msra.mxu0 %v1734
    %v1736 = vand.u32 %v71, 4294901760
    %1737 = vmatpush.msra.mxu0 %v1736
    %v1738 = vand.u32 %v67, 4294901760
    %1739 = vmatpush.msra.mxu0 %v1738
    %v1740 = vand.u32 %v63, 4294901760
    %1741 = vmatpush.msra.mxu0 %v1740
    %v1742 = vand.u32 %v59, 4294901760
    %1743 = vmatpush.msra.mxu0 %v1742
    %v1744 = vand.u32 %v55, 4294901760
    %1745 = vmatpush.msra.mxu0 %v1744
    %v1746 = vand.u32 %v86, 4294901760
    %v1747 = vsub.f32 %v86, %v1746
    %v1748 = vand.u32 %v1747, 4294901760
    %1749 = vmatmul.f32.gmra.mxu0 %v1748
    %v1750 = vpop.f32.mrf.mxu0
    %v1751 = vadd.f32 %v1685, %v1750
    %v1752 = vand.u32 %v89, 4294901760
    %v1753 = vsub.f32 %v89, %v1752
    %v1754 = vand.u32 %v1753, 4294901760
    %1755 = vmatmul.f32.gmra.mxu0 %v1754
    %v1756 = vpop.f32.mrf.mxu0
    %v1757 = vadd.f32 %v1690, %v1756
    %v1758 = vand.u32 %v92, 4294901760
    %v1759 = vsub.f32 %v92, %v1758
    %v1760 = vand.u32 %v1759, 4294901760
    %1761 = vmatmul.f32.gmra.mxu0 %v1760
    %v1762 = vpop.f32.mrf.mxu0
    %v1763 = vadd.f32 %v1695, %v1762
    %v1764 = vand.u32 %v95, 4294901760
    %v1765 = vsub.f32 %v95, %v1764
    %v1766 = vand.u32 %v1765, 4294901760
    %1767 = vmatmul.f32.gmra.mxu0 %v1766
    %v1768 = vpop.f32.mrf.mxu0
    %v1769 = vadd.f32 %v1700, %v1768
    %v1770 = vand.u32 %v98, 4294901760
    %v1771 = vsub.f32 %v98, %v1770
    %v1772 = vand.u32 %v1771, 4294901760
    %1773 = vmatmul.f32.gmra.mxu0 %v1772
    %v1774 = vpop.f32.mrf.mxu0
    %v1775 = vadd.f32 %v1705, %v1774
    %v1776 = vand.u32 %v101, 4294901760
    %v1777 = vsub.f32 %v101, %v1776
    %v1778 = vand.u32 %v1777, 4294901760
    %1779 = vmatmul.f32.gmra.mxu0 %v1778
    %v1780 = vpop.f32.mrf.mxu0
    %v1781 = vadd.f32 %v1710, %v1780
    %v1782 = vand.u32 %v104, 4294901760
    %v1783 = vsub.f32 %v104, %v1782
    %v1784 = vand.u32 %v1783, 4294901760
    %1785 = vmatmul.f32.gmra.mxu0 %v1784
    %v1786 = vpop.f32.mrf.mxu0
    %v1787 = vadd.f32 %v1715, %v1786
    %v1788 = vand.u32 %v107, 4294901760
    %v1789 = vsub.f32 %v107, %v1788
    %v1790 = vand.u32 %v1789, 4294901760
    %1791 = vmatmul.f32.gmra.mxu0 %v1790
    %v1792 = vpop.f32.mrf.mxu0
    %v1793 = vadd.f32 %v1720, %v1792
    %1794 = vdwg.mxu0
    %1795 = vmatpush.msra.mxu0 0.0
    %1796 = vmatpush.msra.mxu0 0.0
    %1797 = vmatpush.msra.mxu0 0.0
    %1798 = vmatpush.msra.mxu0 0.0
    %1799 = vmatpush.msra.mxu0 0.0
    %1800 = vmatpush.msra.mxu0 0.0
    %1801 = vmatpush.msra.mxu0 0.0
    %1802 = vmatpush.msra.mxu0 0.0
    %v1803 = vand.u32 %v83, 4294901760
    %v1804 = vsub.f32 %v83, %v1803
    %v1805 = vand.u32 %v1804, 4294901760
    %1806 = vmatpush.msra.mxu0 %v1805
    %v1807 = vand.u32 %v79, 4294901760
    %v1808 = vsub.f32 %v79, %v1807
    %v1809 = vand.u32 %v1808, 4294901760
    %1810 = vmatpush.msra.mxu0 %v1809
    %v1811 = vand.u32 %v75, 4294901760
    %v1812 = vsub.f32 %v75, %v1811
    %v1813 = vand.u32 %v1812, 4294901760
    %1814 = vmatpush.msra.mxu0 %v1813
    %v1815 = vand.u32 %v71, 4294901760
    %v1816 = vsub.f32 %v71, %v1815
    %v1817 = vand.u32 %v1816, 4294901760
    %1818 = vmatpush.msra.mxu0 %v1817
    %v1819 = vand.u32 %v67, 4294901760
    %v1820 = vsub.f32 %v67, %v1819
    %v1821 = vand.u32 %v1820, 4294901760
    %1822 = vmatpush.msra.mxu0 %v1821
    %v1823 = vand.u32 %v63, 4294901760
    %v1824 = vsub.f32 %v63, %v1823
    %v1825 = vand.u32 %v1824, 4294901760
    %1826 = vmatpush.msra.mxu0 %v1825
    %v1827 = vand.u32 %v59, 4294901760
    %v1828 = vsub.f32 %v59, %v1827
    %v1829 = vand.u32 %v1828, 4294901760
    %1830 = vmatpush.msra.mxu0 %v1829
    %v1831 = vand.u32 %v55, 4294901760
    %v1832 = vsub.f32 %v55, %v1831
    %v1833 = vand.u32 %v1832, 4294901760
    %1834 = vmatpush.msra.mxu0 %v1833
    %v1835 = vand.u32 %v86, 4294901760
    %1836 = vmatmul.f32.gmra.mxu0 %v1835
    %v1837 = vpop.f32.mrf.mxu0
    %v1838 = vadd.f32 %v1751, %v1837
    %v1839 = vand.u32 %v89, 4294901760
    %1840 = vmatmul.f32.gmra.mxu0 %v1839
    %v1841 = vpop.f32.mrf.mxu0
    %v1842 = vadd.f32 %v1757, %v1841
    %v1843 = vand.u32 %v92, 4294901760
    %1844 = vmatmul.f32.gmra.mxu0 %v1843
    %v1845 = vpop.f32.mrf.mxu0
    %v1846 = vadd.f32 %v1763, %v1845
    %v1847 = vand.u32 %v95, 4294901760
    %1848 = vmatmul.f32.gmra.mxu0 %v1847
    %v1849 = vpop.f32.mrf.mxu0
    %v1850 = vadd.f32 %v1769, %v1849
    %v1851 = vand.u32 %v98, 4294901760
    %1852 = vmatmul.f32.gmra.mxu0 %v1851
    %v1853 = vpop.f32.mrf.mxu0
    %v1854 = vadd.f32 %v1775, %v1853
    %v1855 = vand.u32 %v101, 4294901760
    %1856 = vmatmul.f32.gmra.mxu0 %v1855
    %v1857 = vpop.f32.mrf.mxu0
    %v1858 = vadd.f32 %v1781, %v1857
    %v1859 = vand.u32 %v104, 4294901760
    %1860 = vmatmul.f32.gmra.mxu0 %v1859
    %v1861 = vpop.f32.mrf.mxu0
    %v1862 = vadd.f32 %v1787, %v1861
    %v1863 = vand.u32 %v107, 4294901760
    %1864 = vmatmul.f32.gmra.mxu0 %v1863
    %v1865 = vpop.f32.mrf.mxu0
    %v1866 = vadd.f32 %v1793, %v1865
    %1867 = vdwg.mxu0
    %1868 = vmatpush.msra.mxu0 0.0
    %1869 = vmatpush.msra.mxu0 0.0
    %1870 = vmatpush.msra.mxu0 0.0
    %1871 = vmatpush.msra.mxu0 0.0
    %1872 = vmatpush.msra.mxu0 0.0
    %1873 = vmatpush.msra.mxu0 0.0
    %1874 = vmatpush.msra.mxu0 0.0
    %1875 = vmatpush.msra.mxu0 0.0
    %v1876 = vand.u32 %v83, 4294901760
    %1877 = vmatpush.msra.mxu0 %v1876
    %v1878 = vand.u32 %v79, 4294901760
    %1879 = vmatpush.msra.mxu0 %v1878
    %v1880 = vand.u32 %v75, 4294901760
    %1881 = vmatpush.msra.mxu0 %v1880
    %v1882 = vand.u32 %v71, 4294901760
    %1883 = vmatpush.msra.mxu0 %v1882
    %v1884 = vand.u32 %v67, 4294901760
    %1885 = vmatpush.msra.mxu0 %v1884
    %v1886 = vand.u32 %v63, 4294901760
    %1887 = vmatpush.msra.mxu0 %v1886
    %v1888 = vand.u32 %v59, 4294901760
    %1889 = vmatpush.msra.mxu0 %v1888
    %v1890 = vand.u32 %v55, 4294901760
    %1891 = vmatpush.msra.mxu0 %v1890
    %v1892 = vand.u32 %v86, 4294901760
    %1893 = vmatmul.f32.gmra.mxu0 %v1892
    %v1894 = vpop.f32.mrf.mxu0
    %v1895 = vadd.f32 %v1838, %v1894
    %v1896 = vand.u32 %v89, 4294901760
    %1897 = vmatmul.f32.gmra.mxu0 %v1896
    %v1898 = vpop.f32.mrf.mxu0
    %v1899 = vadd.f32 %v1842, %v1898
    %v1900 = vand.u32 %v92, 4294901760
    %1901 = vmatmul.f32.gmra.mxu0 %v1900
    %v1902 = vpop.f32.mrf.mxu0
    %v1903 = vadd.f32 %v1846, %v1902
    %v1904 = vand.u32 %v95, 4294901760
    %1905 = vmatmul.f32.gmra.mxu0 %v1904
    %v1906 = vpop.f32.mrf.mxu0
    %v1907 = vadd.f32 %v1850, %v1906
    %v1908 = vand.u32 %v98, 4294901760
    %1909 = vmatmul.f32.gmra.mxu0 %v1908
    %v1910 = vpop.f32.mrf.mxu0
    %v1911 = vadd.f32 %v1854, %v1910
    %v1912 = vand.u32 %v101, 4294901760
    %1913 = vmatmul.f32.gmra.mxu0 %v1912
    %v1914 = vpop.f32.mrf.mxu0
    %v1915 = vadd.f32 %v1858, %v1914
    %v1916 = vand.u32 %v104, 4294901760
    %1917 = vmatmul.f32.gmra.mxu0 %v1916
    %v1918 = vpop.f32.mrf.mxu0
    %v1919 = vadd.f32 %v1862, %v1918
    %v1920 = vand.u32 %v107, 4294901760
    %1921 = vmatmul.f32.gmra.mxu0 %v1920
    %v1922 = vpop.f32.mrf.mxu0
    %v1923 = vadd.f32 %v1866, %v1922
    %1924 = vdwg.mxu0
    %1925 = vst [vmem:[#allocation7] sm:$0xff] %v533
    %1926 = vst [vmem:[#allocation7 + $0x8] sm:$0xff] %v987
    %1927 = vst [vmem:[#allocation7 + $0x10] sm:$0xff] %v1441
    %1928 = vst [vmem:[#allocation7 + $0x18] sm:$0xff] %v1895
    %1929 = vst [vmem:[#allocation7 + $0x20] sm:$0xff] %v537
    %1930 = vst [vmem:[#allocation7 + $0x28] sm:$0xff] %v991
    %1931 = vst [vmem:[#allocation7 + $0x30] sm:$0xff] %v1445
    %1932 = vst [vmem:[#allocation7 + $0x38] sm:$0xff] %v1899
    %1933 = vst [vmem:[#allocation7 + $0x40] sm:$0xff] %v541
    %1934 = vst [vmem:[#allocation7 + $0x48] sm:$0xff] %v995
    %1935 = vst [vmem:[#allocation7 + $0x50] sm:$0xff] %v1449
    %1936 = vst [vmem:[#allocation7 + $0x58] sm:$0xff] %v1903
    %1937 = vst [vmem:[#allocation7 + $0x60] sm:$0xff] %v545
    %1938 = vst [vmem:[#allocation7 + $0x68] sm:$0xff] %v999
    %1939 = vst [vmem:[#allocation7 + $0x70] sm:$0xff] %v1453
    %1940 = vst [vmem:[#allocation7 + $0x78] sm:$0xff] %v1907
    %1941 = vst [vmem:[#allocation7 + $0x80] sm:$0xff] %v549
    %1942 = vst [vmem:[#allocation7 + $0x88] sm:$0xff] %v1003
    %1943 = vst [vmem:[#allocation7 + $0x90] sm:$0xff] %v1457
    %1944 = vst [vmem:[#allocation7 + $0x98] sm:$0xff] %v1911
    %1945 = vst [vmem:[#allocation7 + $0xa0] sm:$0xff] %v553
    %1946 = vst [vmem:[#allocation7 + $0xa8] sm:$0xff] %v1007
    %1947 = vst [vmem:[#allocation7 + $0xb0] sm:$0xff] %v1461
    %1948 = vst [vmem:[#allocation7 + $0xb8] sm:$0xff] %v1915
    %1949 = vst [vmem:[#allocation7 + $0xc0] sm:$0xff] %v557
    %1950 = vst [vmem:[#allocation7 + $0xc8] sm:$0xff] %v1011
    %1951 = vst [vmem:[#allocation7 + $0xd0] sm:$0xff] %v1465
    %1952 = vst [vmem:[#allocation7 + $0xd8] sm:$0xff] %v1919
    %1953 = vst [vmem:[#allocation7 + $0xe0] sm:$0xff] %v561
    %1954 = vst [vmem:[#allocation7 + $0xe8] sm:$0xff] %v1015
    %1955 = vst [vmem:[#allocation7 + $0xf0] sm:$0xff] %v1469
    %1956 = vst [vmem:[#allocation7 + $0xf8] sm:$0xff] %v1923
    // Predicated region
    $region18: #{tpu_custom_call.1} parent=1 // pred_check
      _
    $region19: #{tpu_custom_call.1} parent=1 // pred_check_branch
      %1958 = sbr.rel (0) target = $region21
    $region20: #{tpu_custom_call.1} parent=1 // pred_region
      %1960 = vsyncadd [#allocation4], 0
      %s1961 = sshll.u32 [#allocation7], 4
      %s1962 = int_to_ptr.vmem [resolvable:$true] %s1961
      %s1963 = sshll.u32 %s2, 4
      %s1964 = int_to_ptr.hbm [resolvable:$true] %s1963
      %1969 = dma.vmem_to_hbm [thread:$0]  %s1962, 4096, %s1964, [#allocation4], 512, 512, 32
    $region21: #{tpu_custom_call.1} parent=1 // pred_fallthru
      _
    // Predicated region
    $region22: #{tpu_custom_call.1} parent=1 // pred_check
      _
    $region23: #{tpu_custom_call.1} parent=1 // pred_check_branch
      %1971 = sbr.rel (0) target = $region25
    $region24: #{tpu_custom_call.1} parent=1 // pred_region
      %1973 = dma.done [#allocation4], 4096
    $region25: #{tpu_custom_call.1} parent=1 // pred_fallthru
      _
    %1974 = vsyncpa [#allocation3], 1
    %1975 = vsyncpa [#allocation6], 1
    %1976 = vsyncpa [#allocation4], 1

</llo_original>
